<compile_context>
chip_gen: v7x
topology: tpu7x:2x2x1
jax: 0.10.0
libtpu: 0.0.40
codegen_flags: <defaults>
</compile_context>

<pallas_src>
import jax
import jax.numpy as jnp
from jax.experimental import pallas as pl
from jax.experimental.pallas import tpu as pltpu


# ----------------------------- Pallas kernel ------------------------------ #

def _make_fused_kernel(T, N, Hs):
    """Fused bi-LSTM "last time step" kernel for both branches.

    x_ref   : (T*N, Dr+Dg)   time-major flattened fused input (row = t*N + n)
    w_ref   : (Dr+Dg, 8*Hs)  block-diag input weights  [fwd gate slab | bwd]
    b_ref   : (1, 8*Hs)      summed ih+hh biases, same layout
    whh_ref : (Hs, 4*Hs)     block-diag forward recurrent weights
    out_ref : (N, 2*Hs)      [:, :Hs]  = [h_r_fwd | h_g_fwd] at t = T-1
                             [:, Hs:]  = [h_r_bwd | h_g_bwd] at t = T-1
    Gate column order inside a 4*Hs slab: [ i_r i_g | f_r f_g | o_r o_g | g_r g_g ].
    """
    G = 4 * Hs  # width of one direction's gate slab (one lane tile in demo)

    def kernel(x_ref, w_ref, b_ref, whh_ref, out_ref):
        # Hoisted, fused input projection: both branches (block-diagonal W),
        # both directions, bias folded in.  One big MXU matmul per call.
        xproj = (jnp.dot(x_ref[...], w_ref[...],
                         preferred_element_type=jnp.float32)
                 + b_ref[...])                                  # (T*N, 8*Hs)
        whh = whh_ref[...]                                      # (Hs, 4*Hs)

        # Backward direction at output[:, -1, H:] is its FIRST step from the
        # zero state: recurrent term and f*c0 are exactly zero, only the
        # projection matters.  Its gates are the second lane tile (cols G:2G)
        # of the last time step -> one full tile-aligned read.  Computed
        # before the forward loop so it overlaps the prologue.
        gb = xproj[(T - 1) * N:T * N, G:2 * G]                  # (N, 4*Hs)
        sb = jax.nn.sigmoid(gb[:, 0:3 * Hs])                    # [i | f | o]
        tb = jnp.tanh(gb[:, 3 * Hs:4 * Hs])                     # g
        h_b = sb[:, 2 * Hs:3 * Hs] * jnp.tanh(sb[:, 0:Hs] * tb)

        # Fused forward recurrence over both branches, fully unrolled
        # (T static & small).  Each step: ONE (N,Hs)x(Hs,4*Hs) MXU matmul +
        # two wide EUP calls (sigmoid slab, tanh slab) + VPU elementwise.
        h = jnp.zeros((N, Hs), jnp.float32)
        c = jnp.zeros((N, Hs), jnp.float32)
        for ts in range(T):
            gates = xproj[ts * N:(ts + 1) * N, 0:G] + jnp.dot(
                h, whh, preferred_element_type=jnp.float32)     # (N, 4*Hs)
            sig = jax.nn.sigmoid(gates[:, 0:3 * Hs])            # [i | f | o]
            g = jnp.tanh(gates[:, 3 * Hs:4 * Hs])
            c = sig[:, Hs:2 * Hs] * c + sig[:, 0:Hs] * g        # f*c + i*g
            h = sig[:, 2 * Hs:3 * Hs] * jnp.tanh(c)             # o*tanh(c)

        # Direct column-slice stores (no in-kernel concatenate).
        out_ref[:, 0:Hs] = h.astype(out_ref.dtype)
        out_ref[:, Hs:2 * Hs] = h_b.astype(out_ref.dtype)

    return kernel


def fused_bilstm_last(x2d, packed, *, T, N, Hs):
    """x2d: (T*N, Dr+Dg) time-major fused input -> (N, 2*Hs) fused output."""
    kernel = _make_fused_kernel(T, N, Hs)
    vmem = pl.BlockSpec(memory_space=pltpu.MemorySpace.VMEM)
    # TODO(synk): at production batch sizes, add a 1-D grid over N rows
    # (row tiles in multiples of 8, dimension_semantics=("parallel",)) so a
    # v7x chip's second TensorCore is used; at this toy N a grid is overhead.
    return pl.pallas_call(
        kernel,
        out_shape=jax.ShapeDtypeStruct((N, 2 * Hs), jnp.float32),
        in_specs=[vmem, vmem, vmem, vmem],
        out_specs=vmem,
    )(x2d, packed["w_proj"], packed["b_proj"], packed["whh_blk"])


# ------------------------------ Parameters -------------------------------- #

def init_raw_lstm_branch(key, D, H, forget_bias):
    """Per-branch synthetic parameters in PyTorch layout (gate rows i,f,g,o).

    `b_*` holds the SUM bias_ih + bias_hh (PyTorch init sets both forget-gate
    blocks, hence forget_bias = 2.0 / 3.0 for the two branches).
    The backward weight_hh is never needed: at output[:, -1, H:] the reverse
    LSTM has taken a single step from the zero hidden state.
    """
    # TODO(synk): synthetic init (normal noise) — not bitwise PyTorch init
    # (orthogonal weight_hh / xavier weight_ih); fine for a runnable demo.
    ks = jax.random.split(key, 3)
    s_ih = 1.0 / jnp.sqrt(jnp.float32(D))
    s_hh = 1.0 / jnp.sqrt(jnp.float32(H))

    def bias():
        b = jnp.zeros((4 * H,), jnp.float32)
        return b.at[H:2 * H].set(forget_bias)

    return dict(
        H=H, D=D,
        w_ih_fwd=jax.random.normal(ks[0], (4 * H, D), jnp.float32) * s_ih,
        w_hh_fwd=jax.random.normal(ks[1], (4 * H, H), jnp.float32) * s_hh,
        b_fwd=bias(),
        w_ih_bwd=jax.random.normal(ks[2], (4 * H, D), jnp.float32) * s_ih,
        b_bwd=bias(),
    )


def pack_fused_params(raw_r, raw_g):
    """Pack the two branches into fused, block-diagonal, activation-grouped
    kernel parameters (done once at init time; free at run time).

    Gate slab column layout (Hs = Hr + Hg), identical for fwd and bwd slabs:
        [ i_r | i_g | f_r | f_g | o_r | o_g | g_r | g_g ]
    so sigmoid covers cols [0, 3*Hs), tanh covers [3*Hs, 4*Hs), and every gate
    slice lines up with the fused cell/hidden layout [c_r | c_g].
    """
    Hr, Dr = raw_r["H"], raw_r["D"]
    Hg, Dg = raw_g["H"], raw_g["D"]
    Hs, Ds = Hr + Hg, Dr + Dg

    w_proj = jnp.zeros((Ds, 8 * Hs), jnp.float32)
    b_proj = jnp.zeros((1, 8 * Hs), jnp.float32)
    whh_blk = jnp.zeros((Hs, 4 * Hs), jnp.float32)

    src_gate = {"i": 0, "f": 1, "g": 2, "o": 3}   # PyTorch row-block order
    tgt_gate = {"i": 0, "f": 1, "o": 2, "g": 3}   # activation-grouped order

    for raw, d_off, h_off in ((raw_r, 0, 0), (raw_g, Dr, Hr)):
        H, D = raw["H"], raw["D"]
        for direction, base in (("fwd", 0), ("bwd", 4 * Hs)):
            w_ih = raw[f"w_ih_{direction}"]          # (4H, D)
            bias = raw[f"b_{direction}"]             # (4H,)
            for gname in ("i", "f", "g", "o"):
                s0 = src_gate[gname] * H
                c0 = base + tgt_gate[gname] * Hs + h_off
                w_proj = w_proj.at[d_off:d_off + D, c0:c0 + H].set(
                    w_ih[s0:s0 + H, :].T)
                b_proj = b_proj.at[0, c0:c0 + H].set(bias[s0:s0 + H])
        w_hh = raw["w_hh_fwd"]                       # (4H, H); bwd unused
        for gname in ("i", "f", "g", "o"):
            s0 = src_gate[gname] * H
            c0 = tgt_gate[gname] * Hs + h_off
            whh_blk = whh_blk.at[h_off:h_off + H, c0:c0 + H].set(
                w_hh[s0:s0 + H, :].T)

    return dict(w_proj=w_proj, b_proj=b_proj, whh_blk=whh_blk)


# --------------------------- Module forward pass --------------------------- #

def temporal_feature_learner(regional_feature, global_feature, packed, *,
                             k, t, regions, regional_size, global_size,
                             regional_temporal_size, global_temporal_size):
    Hr = regional_temporal_size // 2
    Hg = global_temporal_size // 2
    Hs = Hr + Hg
    Dr = 2 * regional_size
    Dg = global_size * k

    # Regional branch rows: (B, t, regions, Dr) -> (B*regions, t, Dr).
    rf = regional_feature.reshape(-1, t, regions, Dr)
    rf = jnp.transpose(rf, (0, 2, 1, 3)).reshape(-1, t, Dr)
    Nr = rf.shape[0]
    # Global branch rows: (B, t, k, gs) -> (B, t, Dg).
    gf = global_feature.reshape(-1, t, Dg)
    Ng = gf.shape[0]

    # Pad both branches to a common, sublane-aligned row count and fuse along
    # features (block-diagonal weights keep the branches independent).
    N_pad = -(-max(Nr, Ng) // 8) * 8
    rf = jnp.pad(rf, ((0, N_pad - Nr), (0, 0), (0, 0)))
    gf = jnp.pad(gf, ((0, N_pad - Ng), (0, 0), (0, 0)))
    x = jnp.concatenate([rf, gf], axis=-1)                      # (N, t, Dr+Dg)

    # Time-major flatten: row index = time * N + batch-row.
    # TODO(synk): at production batch sizes fold this relayout into the kernel
    # (BlockSpec index_map / in-kernel indexing) instead of an HBM transpose.
    x2d = jnp.transpose(x, (1, 0, 2)).reshape(t * N_pad, Dr + Dg)

    out = fused_bilstm_last(x2d, packed, T=t, N=N_pad, Hs=Hs)   # (N, 2*Hs)

    # Un-fuse: forward halves in cols [0:Hs] = [h_r_f | h_g_f],
    #          backward halves in cols [Hs:2Hs] = [h_r_b | h_g_b].
    h_r = jnp.concatenate([out[:Nr, 0:Hr], out[:Nr, Hs:Hs + Hr]], axis=1)
    h_g = jnp.concatenate([out[:Ng, Hr:Hs], out[:Ng, Hs + Hr:2 * Hs]], axis=1)

    regional_temporal = h_r.reshape(-1, regions * regional_temporal_size)
    global_temporal = h_g.reshape(-1, global_temporal_size)
    result = jnp.concatenate([global_temporal, regional_temporal], axis=1)
    # TODO(synk): nn.Dropout is identity in eval mode; training-mode random
    # dropout is not reproduced here.
    return result


# ------------------------- Pure-JAX reference (check) ---------------------- #

def _ref_bilstm_last(x, raw):
    """x: (N, T, D) -> (N, 2H): PyTorch-semantics bi-LSTM output at t = T-1."""
    N, T, _ = x.shape
    H = raw["H"]
    h = jnp.zeros((N, H), jnp.float32)
    c = jnp.zeros((N, H), jnp.float32)
    for ts in range(T):
        gates = x[:, ts, :] @ raw["w_ih_fwd"].T + h @ raw["w_hh_fwd"].T + raw["b_fwd"]
        i = jax.nn.sigmoid(gates[:, 0:H])
        f = jax.nn.sigmoid(gates[:, H:2 * H])
        g = jnp.tanh(gates[:, 2 * H:3 * H])
        o = jax.nn.sigmoid(gates[:, 3 * H:4 * H])
        c = f * c + i * g
        h = o * jnp.tanh(c)
    gb = x[:, T - 1, :] @ raw["w_ih_bwd"].T + raw["b_bwd"]
    i_b = jax.nn.sigmoid(gb[:, 0:H])
    g_b = jnp.tanh(gb[:, 2 * H:3 * H])
    o_b = jax.nn.sigmoid(gb[:, 3 * H:4 * H])
    h_b = o_b * jnp.tanh(i_b * g_b)
    return jnp.concatenate([h, h_b], axis=1)


def _ref_forward(regional_feature, global_feature, raw_r, raw_g, *,
                 k, t, regions, regional_size, global_size,
                 regional_temporal_size, global_temporal_size):
    Dr = 2 * regional_size
    Dg = global_size * k
    rf = regional_feature.reshape(-1, t, regions, Dr)
    rf = jnp.transpose(rf, (0, 2, 1, 3)).reshape(-1, t, Dr)
    gf = global_feature.reshape(-1, t, Dg)
    r_out = _ref_bilstm_last(rf, raw_r)
    g_out = _ref_bilstm_last(gf, raw_g)
    regional_temporal = r_out.reshape(-1, regions * regional_temporal_size)
    global_temporal = g_out.reshape(-1, global_temporal_size)
    return jnp.concatenate([global_temporal, regional_temporal], axis=1)


# ---------------------------------- Main ----------------------------------- #

if __name__ == "__main__":
    # Small config consistent with the module's constructor semantics.
    B = 2
    k, t, regions = 3, 9, 4
    regional_size, global_size = 16, 32          # Dr = 32, Dg = 96 -> 128 lanes
    regional_temporal_size, global_temporal_size = 32, 32   # Hr = Hg = 16

    key = jax.random.PRNGKey(0)
    k_rf, k_gf, k_rp, k_gp = jax.random.split(key, 4)

    regional_feature = jax.random.normal(
        k_rf, (B, t, regions, 2 * regional_size), jnp.float32)
    global_feature = jax.random.normal(
        k_gf, (B, t, k, global_size), jnp.float32)

    raw_r = init_raw_lstm_branch(
        k_rp, D=2 * regional_size, H=regional_temporal_size // 2,
        forget_bias=2.0)   # bias_ih + bias_hh forget gates both = 1.0
    raw_g = init_raw_lstm_branch(
        k_gp, D=global_size * k, H=global_temporal_size // 2,
        forget_bias=3.0)   # bias_ih + bias_hh forget gates both = 1.5
    packed = pack_fused_params(raw_r, raw_g)

    fwd = jax.jit(lambda rf, gf: temporal_feature_learner(
        rf, gf, packed,
        k=k, t=t, regions=regions,
        regional_size=regional_size, global_size=global_size,
        regional_temporal_size=regional_temporal_size,
        global_temporal_size=global_temporal_size))

    out = fwd(regional_feature, global_feature)
    jax.block_until_ready(out)

    expected = (B, global_temporal_size + regions * regional_temporal_size)
    assert out.shape == expected, (out.shape, expected)
    assert out.dtype == jnp.float32

    # Validate the block-diagonal / gate-permuted packing against an unfused
    # pure-JAX reference.  Loose tolerance absorbs MXU precision differences.
    ref = _ref_forward(
        regional_feature, global_feature, raw_r, raw_g,
        k=k, t=t, regions=regions,
        regional_size=regional_size, global_size=global_size,
        regional_temporal_size=regional_temporal_size,
        global_temporal_size=global_temporal_size)
    err = float(jnp.max(jnp.abs(out - ref)))
    assert err < 1e-1, f"max abs error vs reference: {err}"

    print("KERNEL_OK")
</pallas_src>

<mosaic_0001>
module attributes {stable_mosaic.version = 11 : i64} {
  func.func @kernel(%arg0: memref<72x128xf32, #tpu.memory_space<vmem>>, %arg1: memref<128x256xf32, #tpu.memory_space<vmem>>, %arg2: memref<1x256xf32, #tpu.memory_space<vmem>>, %arg3: memref<32x128xf32, #tpu.memory_space<vmem>>, %arg4: memref<8x64xf32, #tpu.memory_space<vmem>>) attributes {dimension_semantics = [], scalar_prefetch = 0 : i64, scratch_operands = 0 : i64, tpu.core_type = #tpu.core_type<tc>} {
    %c0 = arith.constant 0 : index
    %c0_0 = arith.constant 0 : index
    %0 = vector.load %arg0[%c0, %c0_0] : memref<72x128xf32, #tpu.memory_space<vmem>>, vector<72x128xf32>
    %c0_1 = arith.constant 0 : index
    %c0_2 = arith.constant 0 : index
    %1 = vector.load %arg1[%c0_1, %c0_2] : memref<128x256xf32, #tpu.memory_space<vmem>>, vector<128x256xf32>
    %cst = arith.constant dense<0.000000e+00> : vector<72x256xf32>
    %2 = tpu.matmul %0, %1, %cst {dimension_numbers = #tpu.dot_dimension_numbers<[1], [0], [0], [1], [0, 0, 1, 1], [], []>} : vector<72x128xf32>, vector<128x256xf32>, vector<72x256xf32> -> vector<72x256xf32>
    %c0_3 = arith.constant 0 : index
    %c0_4 = arith.constant 0 : index
    %3 = vector.load %arg2[%c0_3, %c0_4] : memref<1x256xf32, #tpu.memory_space<vmem>>, vector<1x256xf32>
    %4 = vector.broadcast %3 : vector<1x256xf32> to vector<72x256xf32>
    %5 = arith.addf %2, %4 : vector<72x256xf32>
    %c0_5 = arith.constant 0 : index
    %c0_6 = arith.constant 0 : index
    %6 = vector.load %arg3[%c0_5, %c0_6] : memref<32x128xf32, #tpu.memory_space<vmem>>, vector<32x128xf32>
    %7 = vector.extract_strided_slice %5 {offsets = [64, 128], sizes = [8, 128], strides = [1, 1]} : vector<72x256xf32> to vector<8x128xf32>
    %8 = vector.extract_strided_slice %7 {offsets = [0, 0], sizes = [8, 96], strides = [1, 1]} : vector<8x128xf32> to vector<8x96xf32>
    %9 = arith.negf %8 : vector<8x96xf32>
    %10 = math.exp %9 : vector<8x96xf32>
    %cst_7 = arith.constant 1.000000e+00 : f32
    %11 = vector.broadcast %cst_7 : f32 to vector<8x96xf32>
    %12 = arith.addf %11, %10 : vector<8x96xf32>
    %13 = arith.divf %11, %12 : vector<8x96xf32>
    %14 = vector.extract_strided_slice %7 {offsets = [0, 96], sizes = [8, 32], strides = [1, 1]} : vector<8x128xf32> to vector<8x32xf32>
    %15 = math.tanh %14 : vector<8x32xf32>
    %16 = vector.extract_strided_slice %13 {offsets = [0, 64], sizes = [8, 32], strides = [1, 1]} : vector<8x96xf32> to vector<8x32xf32>
    %17 = vector.extract_strided_slice %13 {offsets = [0, 0], sizes = [8, 32], strides = [1, 1]} : vector<8x96xf32> to vector<8x32xf32>
    %18 = arith.mulf %17, %15 : vector<8x32xf32>
    %19 = math.tanh %18 : vector<8x32xf32>
    %20 = arith.mulf %16, %19 : vector<8x32xf32>
    %cst_8 = arith.constant 0.000000e+00 : f32
    %21 = vector.broadcast %cst_8 : f32 to vector<8x32xf32>
    %cst_9 = arith.constant 0.000000e+00 : f32
    %22 = vector.broadcast %cst_9 : f32 to vector<8x32xf32>
    %23 = vector.extract_strided_slice %5 {offsets = [0, 0], sizes = [8, 128], strides = [1, 1]} : vector<72x256xf32> to vector<8x128xf32>
    %cst_10 = arith.constant dense<0.000000e+00> : vector<8x128xf32>
    %24 = tpu.matmul %21, %6, %cst_10 {dimension_numbers = #tpu.dot_dimension_numbers<[1], [0], [0], [1], [0, 0, 1, 1], [], []>} : vector<8x32xf32>, vector<32x128xf32>, vector<8x128xf32> -> vector<8x128xf32>
    %25 = arith.addf %23, %24 : vector<8x128xf32>
    %26 = vector.extract_strided_slice %25 {offsets = [0, 0], sizes = [8, 96], strides = [1, 1]} : vector<8x128xf32> to vector<8x96xf32>
    %27 = arith.negf %26 : vector<8x96xf32>
    %28 = math.exp %27 : vector<8x96xf32>
    %cst_11 = arith.constant 1.000000e+00 : f32
    %29 = vector.broadcast %cst_11 : f32 to vector<8x96xf32>
    %30 = arith.addf %29, %28 : vector<8x96xf32>
    %31 = arith.divf %29, %30 : vector<8x96xf32>
    %32 = vector.extract_strided_slice %25 {offsets = [0, 96], sizes = [8, 32], strides = [1, 1]} : vector<8x128xf32> to vector<8x32xf32>
    %33 = math.tanh %32 : vector<8x32xf32>
    %34 = vector.extract_strided_slice %31 {offsets = [0, 32], sizes = [8, 32], strides = [1, 1]} : vector<8x96xf32> to vector<8x32xf32>
    %35 = arith.mulf %34, %22 : vector<8x32xf32>
    %36 = vector.extract_strided_slice %31 {offsets = [0, 0], sizes = [8, 32], strides = [1, 1]} : vector<8x96xf32> to vector<8x32xf32>
    %37 = arith.mulf %36, %33 : vector<8x32xf32>
    %38 = arith.addf %35, %37 : vector<8x32xf32>
    %39 = vector.extract_strided_slice %31 {offsets = [0, 64], sizes = [8, 32], strides = [1, 1]} : vector<8x96xf32> to vector<8x32xf32>
    %40 = math.tanh %38 : vector<8x32xf32>
    %41 = arith.mulf %39, %40 : vector<8x32xf32>
    %42 = vector.extract_strided_slice %5 {offsets = [8, 0], sizes = [8, 128], strides = [1, 1]} : vector<72x256xf32> to vector<8x128xf32>
    %cst_12 = arith.constant dense<0.000000e+00> : vector<8x128xf32>
    %43 = tpu.matmul %41, %6, %cst_12 {dimension_numbers = #tpu.dot_dimension_numbers<[1], [0], [0], [1], [0, 0, 1, 1], [], []>} : vector<8x32xf32>, vector<32x128xf32>, vector<8x128xf32> -> vector<8x128xf32>
    %44 = arith.addf %42, %43 : vector<8x128xf32>
    %45 = vector.extract_strided_slice %44 {offsets = [0, 0], sizes = [8, 96], strides = [1, 1]} : vector<8x128xf32> to vector<8x96xf32>
    %46 = arith.negf %45 : vector<8x96xf32>
    %47 = math.exp %46 : vector<8x96xf32>
    %cst_13 = arith.constant 1.000000e+00 : f32
    %48 = vector.broadcast %cst_13 : f32 to vector<8x96xf32>
    %49 = arith.addf %48, %47 : vector<8x96xf32>
    %50 = arith.divf %48, %49 : vector<8x96xf32>
    %51 = vector.extract_strided_slice %44 {offsets = [0, 96], sizes = [8, 32], strides = [1, 1]} : vector<8x128xf32> to vector<8x32xf32>
    %52 = math.tanh %51 : vector<8x32xf32>
    %53 = vector.extract_strided_slice %50 {offsets = [0, 32], sizes = [8, 32], strides = [1, 1]} : vector<8x96xf32> to vector<8x32xf32>
    %54 = arith.mulf %53, %38 : vector<8x32xf32>
    %55 = vector.extract_strided_slice %50 {offsets = [0, 0], sizes = [8, 32], strides = [1, 1]} : vector<8x96xf32> to vector<8x32xf32>
    %56 = arith.mulf %55, %52 : vector<8x32xf32>
    %57 = arith.addf %54, %56 : vector<8x32xf32>
    %58 = vector.extract_strided_slice %50 {offsets = [0, 64], sizes = [8, 32], strides = [1, 1]} : vector<8x96xf32> to vector<8x32xf32>
    %59 = math.tanh %57 : vector<8x32xf32>
    %60 = arith.mulf %58, %59 : vector<8x32xf32>
    %61 = vector.extract_strided_slice %5 {offsets = [16, 0], sizes = [8, 128], strides = [1, 1]} : vector<72x256xf32> to vector<8x128xf32>
    %cst_14 = arith.constant dense<0.000000e+00> : vector<8x128xf32>
    %62 = tpu.matmul %60, %6, %cst_14 {dimension_numbers = #tpu.dot_dimension_numbers<[1], [0], [0], [1], [0, 0, 1, 1], [], []>} : vector<8x32xf32>, vector<32x128xf32>, vector<8x128xf32> -> vector<8x128xf32>
    %63 = arith.addf %61, %62 : vector<8x128xf32>
    %64 = vector.extract_strided_slice %63 {offsets = [0, 0], sizes = [8, 96], strides = [1, 1]} : vector<8x128xf32> to vector<8x96xf32>
    %65 = arith.negf %64 : vector<8x96xf32>
    %66 = math.exp %65 : vector<8x96xf32>
    %cst_15 = arith.constant 1.000000e+00 : f32
    %67 = vector.broadcast %cst_15 : f32 to vector<8x96xf32>
    %68 = arith.addf %67, %66 : vector<8x96xf32>
    %69 = arith.divf %67, %68 : vector<8x96xf32>
    %70 = vector.extract_strided_slice %63 {offsets = [0, 96], sizes = [8, 32], strides = [1, 1]} : vector<8x128xf32> to vector<8x32xf32>
    %71 = math.tanh %70 : vector<8x32xf32>
    %72 = vector.extract_strided_slice %69 {offsets = [0, 32], sizes = [8, 32], strides = [1, 1]} : vector<8x96xf32> to vector<8x32xf32>
    %73 = arith.mulf %72, %57 : vector<8x32xf32>
    %74 = vector.extract_strided_slice %69 {offsets = [0, 0], sizes = [8, 32], strides = [1, 1]} : vector<8x96xf32> to vector<8x32xf32>
    %75 = arith.mulf %74, %71 : vector<8x32xf32>
    %76 = arith.addf %73, %75 : vector<8x32xf32>
    %77 = vector.extract_strided_slice %69 {offsets = [0, 64], sizes = [8, 32], strides = [1, 1]} : vector<8x96xf32> to vector<8x32xf32>
    %78 = math.tanh %76 : vector<8x32xf32>
    %79 = arith.mulf %77, %78 : vector<8x32xf32>
    %80 = vector.extract_strided_slice %5 {offsets = [24, 0], sizes = [8, 128], strides = [1, 1]} : vector<72x256xf32> to vector<8x128xf32>
    %cst_16 = arith.constant dense<0.000000e+00> : vector<8x128xf32>
    %81 = tpu.matmul %79, %6, %cst_16 {dimension_numbers = #tpu.dot_dimension_numbers<[1], [0], [0], [1], [0, 0, 1, 1], [], []>} : vector<8x32xf32>, vector<32x128xf32>, vector<8x128xf32> -> vector<8x128xf32>
    %82 = arith.addf %80, %81 : vector<8x128xf32>
    %83 = vector.extract_strided_slice %82 {offsets = [0, 0], sizes = [8, 96], strides = [1, 1]} : vector<8x128xf32> to vector<8x96xf32>
    %84 = arith.negf %83 : vector<8x96xf32>
    %85 = math.exp %84 : vector<8x96xf32>
    %cst_17 = arith.constant 1.000000e+00 : f32
    %86 = vector.broadcast %cst_17 : f32 to vector<8x96xf32>
    %87 = arith.addf %86, %85 : vector<8x96xf32>
    %88 = arith.divf %86, %87 : vector<8x96xf32>
    %89 = vector.extract_strided_slice %82 {offsets = [0, 96], sizes = [8, 32], strides = [1, 1]} : vector<8x128xf32> to vector<8x32xf32>
    %90 = math.tanh %89 : vector<8x32xf32>
    %91 = vector.extract_strided_slice %88 {offsets = [0, 32], sizes = [8, 32], strides = [1, 1]} : vector<8x96xf32> to vector<8x32xf32>
    %92 = arith.mulf %91, %76 : vector<8x32xf32>
    %93 = vector.extract_strided_slice %88 {offsets = [0, 0], sizes = [8, 32], strides = [1, 1]} : vector<8x96xf32> to vector<8x32xf32>
    %94 = arith.mulf %93, %90 : vector<8x32xf32>
    %95 = arith.addf %92, %94 : vector<8x32xf32>
    %96 = vector.extract_strided_slice %88 {offsets = [0, 64], sizes = [8, 32], strides = [1, 1]} : vector<8x96xf32> to vector<8x32xf32>
    %97 = math.tanh %95 : vector<8x32xf32>
    %98 = arith.mulf %96, %97 : vector<8x32xf32>
    %99 = vector.extract_strided_slice %5 {offsets = [32, 0], sizes = [8, 128], strides = [1, 1]} : vector<72x256xf32> to vector<8x128xf32>
    %cst_18 = arith.constant dense<0.000000e+00> : vector<8x128xf32>
    %100 = tpu.matmul %98, %6, %cst_18 {dimension_numbers = #tpu.dot_dimension_numbers<[1], [0], [0], [1], [0, 0, 1, 1], [], []>} : vector<8x32xf32>, vector<32x128xf32>, vector<8x128xf32> -> vector<8x128xf32>
    %101 = arith.addf %99, %100 : vector<8x128xf32>
    %102 = vector.extract_strided_slice %101 {offsets = [0, 0], sizes = [8, 96], strides = [1, 1]} : vector<8x128xf32> to vector<8x96xf32>
    %103 = arith.negf %102 : vector<8x96xf32>
    %104 = math.exp %103 : vector<8x96xf32>
    %cst_19 = arith.constant 1.000000e+00 : f32
    %105 = vector.broadcast %cst_19 : f32 to vector<8x96xf32>
    %106 = arith.addf %105, %104 : vector<8x96xf32>
    %107 = arith.divf %105, %106 : vector<8x96xf32>
    %108 = vector.extract_strided_slice %101 {offsets = [0, 96], sizes = [8, 32], strides = [1, 1]} : vector<8x128xf32> to vector<8x32xf32>
    %109 = math.tanh %108 : vector<8x32xf32>
    %110 = vector.extract_strided_slice %107 {offsets = [0, 32], sizes = [8, 32], strides = [1, 1]} : vector<8x96xf32> to vector<8x32xf32>
    %111 = arith.mulf %110, %95 : vector<8x32xf32>
    %112 = vector.extract_strided_slice %107 {offsets = [0, 0], sizes = [8, 32], strides = [1, 1]} : vector<8x96xf32> to vector<8x32xf32>
    %113 = arith.mulf %112, %109 : vector<8x32xf32>
    %114 = arith.addf %111, %113 : vector<8x32xf32>
    %115 = vector.extract_strided_slice %107 {offsets = [0, 64], sizes = [8, 32], strides = [1, 1]} : vector<8x96xf32> to vector<8x32xf32>
    %116 = math.tanh %114 : vector<8x32xf32>
    %117 = arith.mulf %115, %116 : vector<8x32xf32>
    %118 = vector.extract_strided_slice %5 {offsets = [40, 0], sizes = [8, 128], strides = [1, 1]} : vector<72x256xf32> to vector<8x128xf32>
    %cst_20 = arith.constant dense<0.000000e+00> : vector<8x128xf32>
    %119 = tpu.matmul %117, %6, %cst_20 {dimension_numbers = #tpu.dot_dimension_numbers<[1], [0], [0], [1], [0, 0, 1, 1], [], []>} : vector<8x32xf32>, vector<32x128xf32>, vector<8x128xf32> -> vector<8x128xf32>
    %120 = arith.addf %118, %119 : vector<8x128xf32>
    %121 = vector.extract_strided_slice %120 {offsets = [0, 0], sizes = [8, 96], strides = [1, 1]} : vector<8x128xf32> to vector<8x96xf32>
    %122 = arith.negf %121 : vector<8x96xf32>
    %123 = math.exp %122 : vector<8x96xf32>
    %cst_21 = arith.constant 1.000000e+00 : f32
    %124 = vector.broadcast %cst_21 : f32 to vector<8x96xf32>
    %125 = arith.addf %124, %123 : vector<8x96xf32>
    %126 = arith.divf %124, %125 : vector<8x96xf32>
    %127 = vector.extract_strided_slice %120 {offsets = [0, 96], sizes = [8, 32], strides = [1, 1]} : vector<8x128xf32> to vector<8x32xf32>
    %128 = math.tanh %127 : vector<8x32xf32>
    %129 = vector.extract_strided_slice %126 {offsets = [0, 32], sizes = [8, 32], strides = [1, 1]} : vector<8x96xf32> to vector<8x32xf32>
    %130 = arith.mulf %129, %114 : vector<8x32xf32>
    %131 = vector.extract_strided_slice %126 {offsets = [0, 0], sizes = [8, 32], strides = [1, 1]} : vector<8x96xf32> to vector<8x32xf32>
    %132 = arith.mulf %131, %128 : vector<8x32xf32>
    %133 = arith.addf %130, %132 : vector<8x32xf32>
    %134 = vector.extract_strided_slice %126 {offsets = [0, 64], sizes = [8, 32], strides = [1, 1]} : vector<8x96xf32> to vector<8x32xf32>
    %135 = math.tanh %133 : vector<8x32xf32>
    %136 = arith.mulf %134, %135 : vector<8x32xf32>
    %137 = vector.extract_strided_slice %5 {offsets = [48, 0], sizes = [8, 128], strides = [1, 1]} : vector<72x256xf32> to vector<8x128xf32>
    %cst_22 = arith.constant dense<0.000000e+00> : vector<8x128xf32>
    %138 = tpu.matmul %136, %6, %cst_22 {dimension_numbers = #tpu.dot_dimension_numbers<[1], [0], [0], [1], [0, 0, 1, 1], [], []>} : vector<8x32xf32>, vector<32x128xf32>, vector<8x128xf32> -> vector<8x128xf32>
    %139 = arith.addf %137, %138 : vector<8x128xf32>
    %140 = vector.extract_strided_slice %139 {offsets = [0, 0], sizes = [8, 96], strides = [1, 1]} : vector<8x128xf32> to vector<8x96xf32>
    %141 = arith.negf %140 : vector<8x96xf32>
    %142 = math.exp %141 : vector<8x96xf32>
    %cst_23 = arith.constant 1.000000e+00 : f32
    %143 = vector.broadcast %cst_23 : f32 to vector<8x96xf32>
    %144 = arith.addf %143, %142 : vector<8x96xf32>
    %145 = arith.divf %143, %144 : vector<8x96xf32>
    %146 = vector.extract_strided_slice %139 {offsets = [0, 96], sizes = [8, 32], strides = [1, 1]} : vector<8x128xf32> to vector<8x32xf32>
    %147 = math.tanh %146 : vector<8x32xf32>
    %148 = vector.extract_strided_slice %145 {offsets = [0, 32], sizes = [8, 32], strides = [1, 1]} : vector<8x96xf32> to vector<8x32xf32>
    %149 = arith.mulf %148, %133 : vector<8x32xf32>
    %150 = vector.extract_strided_slice %145 {offsets = [0, 0], sizes = [8, 32], strides = [1, 1]} : vector<8x96xf32> to vector<8x32xf32>
    %151 = arith.mulf %150, %147 : vector<8x32xf32>
    %152 = arith.addf %149, %151 : vector<8x32xf32>
    %153 = vector.extract_strided_slice %145 {offsets = [0, 64], sizes = [8, 32], strides = [1, 1]} : vector<8x96xf32> to vector<8x32xf32>
    %154 = math.tanh %152 : vector<8x32xf32>
    %155 = arith.mulf %153, %154 : vector<8x32xf32>
    %156 = vector.extract_strided_slice %5 {offsets = [56, 0], sizes = [8, 128], strides = [1, 1]} : vector<72x256xf32> to vector<8x128xf32>
    %cst_24 = arith.constant dense<0.000000e+00> : vector<8x128xf32>
    %157 = tpu.matmul %155, %6, %cst_24 {dimension_numbers = #tpu.dot_dimension_numbers<[1], [0], [0], [1], [0, 0, 1, 1], [], []>} : vector<8x32xf32>, vector<32x128xf32>, vector<8x128xf32> -> vector<8x128xf32>
    %158 = arith.addf %156, %157 : vector<8x128xf32>
    %159 = vector.extract_strided_slice %158 {offsets = [0, 0], sizes = [8, 96], strides = [1, 1]} : vector<8x128xf32> to vector<8x96xf32>
    %160 = arith.negf %159 : vector<8x96xf32>
    %161 = math.exp %160 : vector<8x96xf32>
    %cst_25 = arith.constant 1.000000e+00 : f32
    %162 = vector.broadcast %cst_25 : f32 to vector<8x96xf32>
    %163 = arith.addf %162, %161 : vector<8x96xf32>
    %164 = arith.divf %162, %163 : vector<8x96xf32>
    %165 = vector.extract_strided_slice %158 {offsets = [0, 96], sizes = [8, 32], strides = [1, 1]} : vector<8x128xf32> to vector<8x32xf32>
    %166 = math.tanh %165 : vector<8x32xf32>
    %167 = vector.extract_strided_slice %164 {offsets = [0, 32], sizes = [8, 32], strides = [1, 1]} : vector<8x96xf32> to vector<8x32xf32>
    %168 = arith.mulf %167, %152 : vector<8x32xf32>
    %169 = vector.extract_strided_slice %164 {offsets = [0, 0], sizes = [8, 32], strides = [1, 1]} : vector<8x96xf32> to vector<8x32xf32>
    %170 = arith.mulf %169, %166 : vector<8x32xf32>
    %171 = arith.addf %168, %170 : vector<8x32xf32>
    %172 = vector.extract_strided_slice %164 {offsets = [0, 64], sizes = [8, 32], strides = [1, 1]} : vector<8x96xf32> to vector<8x32xf32>
    %173 = math.tanh %171 : vector<8x32xf32>
    %174 = arith.mulf %172, %173 : vector<8x32xf32>
    %175 = vector.extract_strided_slice %5 {offsets = [64, 0], sizes = [8, 128], strides = [1, 1]} : vector<72x256xf32> to vector<8x128xf32>
    %cst_26 = arith.constant dense<0.000000e+00> : vector<8x128xf32>
    %176 = tpu.matmul %174, %6, %cst_26 {dimension_numbers = #tpu.dot_dimension_numbers<[1], [0], [0], [1], [0, 0, 1, 1], [], []>} : vector<8x32xf32>, vector<32x128xf32>, vector<8x128xf32> -> vector<8x128xf32>
    %177 = arith.addf %175, %176 : vector<8x128xf32>
    %178 = vector.extract_strided_slice %177 {offsets = [0, 0], sizes = [8, 96], strides = [1, 1]} : vector<8x128xf32> to vector<8x96xf32>
    %179 = arith.negf %178 : vector<8x96xf32>
    %180 = math.exp %179 : vector<8x96xf32>
    %cst_27 = arith.constant 1.000000e+00 : f32
    %181 = vector.broadcast %cst_27 : f32 to vector<8x96xf32>
    %182 = arith.addf %181, %180 : vector<8x96xf32>
    %183 = arith.divf %181, %182 : vector<8x96xf32>
    %184 = vector.extract_strided_slice %177 {offsets = [0, 96], sizes = [8, 32], strides = [1, 1]} : vector<8x128xf32> to vector<8x32xf32>
    %185 = math.tanh %184 : vector<8x32xf32>
    %186 = vector.extract_strided_slice %183 {offsets = [0, 32], sizes = [8, 32], strides = [1, 1]} : vector<8x96xf32> to vector<8x32xf32>
    %187 = arith.mulf %186, %171 : vector<8x32xf32>
    %188 = vector.extract_strided_slice %183 {offsets = [0, 0], sizes = [8, 32], strides = [1, 1]} : vector<8x96xf32> to vector<8x32xf32>
    %189 = arith.mulf %188, %185 : vector<8x32xf32>
    %190 = arith.addf %187, %189 : vector<8x32xf32>
    %191 = vector.extract_strided_slice %183 {offsets = [0, 64], sizes = [8, 32], strides = [1, 1]} : vector<8x96xf32> to vector<8x32xf32>
    %192 = math.tanh %190 : vector<8x32xf32>
    %193 = arith.mulf %191, %192 : vector<8x32xf32>
    %c0_28 = arith.constant 0 : index
    %c0_29 = arith.constant 0 : index
    %194 = vector.load %arg4[%c0_28, %c0_29] : memref<8x64xf32, #tpu.memory_space<vmem>>, vector<8x32xf32>
    tpu.vector_store %arg4[%c0_28, %c0_29], %193 {strides = array<i32>} : memref<8x64xf32, #tpu.memory_space<vmem>>, vector<8x32xf32>,
    %c0_30 = arith.constant 0 : index
    %c32 = arith.constant 32 : index
    %195 = vector.load %arg4[%c0_30, %c32] : memref<8x64xf32, #tpu.memory_space<vmem>>, vector<8x32xf32>
    tpu.vector_store %arg4[%c0_30, %c32], %20 {strides = array<i32>} : memref<8x64xf32, #tpu.memory_space<vmem>>, vector<8x32xf32>,
    return
  }
}

</mosaic_0001>

<llo_original>
// kernel: _lambda_.1
$region0: #{_lambda_.1}
  #allocation0 [shape = 'u32[]', space=smem, size = 0x4, offset = 0x4, fixed_abs, tag = 'smem constant byte address 0x4 - core index']
  #allocation1 [shape = 'u32[144,128]{1,0:T(1,128)}', space=vmem, size = 0x12000, scoped, tag = 'internal scratch']
  %s0 = inlined_call_operand.vmem [shape: f32[72,128], index: 0, kind: input, shape index: {}]
  %s1 = inlined_call_operand.vmem [shape: f32[128,256], index: 1, kind: input, shape index: {}]
  %s2 = inlined_call_operand.vmem [shape: f32[1,256], index: 2, kind: input, shape index: {}]
  %s3 = inlined_call_operand.vmem [shape: f32[32,128], index: 3, kind: input, shape index: {}]
  %s4 = inlined_call_operand.vmem [shape: f32[8,64], index: 4, kind: output, shape index: {}]
  %s5 = sld [smem:[#allocation0]]
  $region26: #{_lambda_.1} parent=0
    _
  %s7 = ssub.s32 1, %s5
  %s8 = scalar_select 0, %s7, %s5
  // Predicated region
  $region2: #{_lambda_.1} parent=0 // pred_check
    _
  $region3: #{_lambda_.1} parent=0 // pred_check_branch
    %10 = sbr.rel (0) target = $region5
  $region4: #{_lambda_.1} parent=0 // pred_region
    _
  $region5: #{_lambda_.1} parent=0 // pred_fallthru
    _
  // Predicated region
  $region6: #{_lambda_.1} parent=0 // pred_check
    _
  $region7: #{_lambda_.1} parent=0 // pred_check_branch
    %12 = sbr.rel (0) target = $region9
  $region8: #{_lambda_.1} parent=0 // pred_region
    _
  $region9: #{_lambda_.1} parent=0 // pred_fallthru
    _
  // Predicated region
  $region10: #{_lambda_.1} parent=0 // pred_check
    _
  $region11: #{_lambda_.1} parent=0 // pred_check_branch
    %14 = sbr.rel (0) target = $region13
  $region12: #{_lambda_.1} parent=0 // pred_region
    _
  $region13: #{_lambda_.1} parent=0 // pred_fallthru
    _
  // Predicated region
  $region14: #{_lambda_.1} parent=0 // pred_check
    _
  $region15: #{_lambda_.1} parent=0 // pred_check_branch
    %16 = sbr.rel (0) target = $region17
  $region16: #{_lambda_.1} parent=0 // pred_region
    _
  $region17: #{_lambda_.1} parent=0 // pred_fallthru
    _
  %v17 = vld [vmem:[%s0] sm:$0xff]
  %v18 = vld [vmem:[%s0 + $0x8] sm:$0xff]
  %v19 = vld [vmem:[%s0 + $0x10] sm:$0xff]
  %v20 = vld [vmem:[%s0 + $0x18] sm:$0xff]
  %v21 = vld [vmem:[%s0 + $0x20] sm:$0xff]
  %v22 = vld [vmem:[%s0 + $0x28] sm:$0xff]
  %v23 = vld [vmem:[%s0 + $0x30] sm:$0xff]
  %v24 = vld [vmem:[%s0 + $0x38] sm:$0xff]
  %v25 = vld [vmem:[%s0 + $0x40] sm:$0xff]
  %v26 = vld [vmem:[%s1] sm:$0xff]
  %v27 = vld [vmem:[%s1 + $0x8] sm:$0xff]
  %v28 = vld [vmem:[%s1 + $0x10] sm:$0xff]
  %v29 = vld [vmem:[%s1 + $0x18] sm:$0xff]
  %v30 = vld [vmem:[%s1 + $0x20] sm:$0xff]
  %v31 = vld [vmem:[%s1 + $0x28] sm:$0xff]
  %v32 = vld [vmem:[%s1 + $0x30] sm:$0xff]
  %v33 = vld [vmem:[%s1 + $0x38] sm:$0xff]
  %v34 = vld [vmem:[%s1 + $0x40] sm:$0xff]
  %v35 = vld [vmem:[%s1 + $0x48] sm:$0xff]
  %v36 = vld [vmem:[%s1 + $0x50] sm:$0xff]
  %v37 = vld [vmem:[%s1 + $0x58] sm:$0xff]
  %v38 = vld [vmem:[%s1 + $0x60] sm:$0xff]
  %v39 = vld [vmem:[%s1 + $0x68] sm:$0xff]
  %v40 = vld [vmem:[%s1 + $0x70] sm:$0xff]
  %v41 = vld [vmem:[%s1 + $0x78] sm:$0xff]
  %v42 = vld [vmem:[%s1 + $0x80] sm:$0xff]
  %v43 = vld [vmem:[%s1 + $0x88] sm:$0xff]
  %v44 = vld [vmem:[%s1 + $0x90] sm:$0xff]
  %v45 = vld [vmem:[%s1 + $0x98] sm:$0xff]
  %v46 = vld [vmem:[%s1 + $0xa0] sm:$0xff]
  %v47 = vld [vmem:[%s1 + $0xa8] sm:$0xff]
  %v48 = vld [vmem:[%s1 + $0xb0] sm:$0xff]
  %v49 = vld [vmem:[%s1 + $0xb8] sm:$0xff]
  %v50 = vld [vmem:[%s1 + $0xc0] sm:$0xff]
  %v51 = vld [vmem:[%s1 + $0xc8] sm:$0xff]
  %v52 = vld [vmem:[%s1 + $0xd0] sm:$0xff]
  %v53 = vld [vmem:[%s1 + $0xd8] sm:$0xff]
  %v54 = vld [vmem:[%s1 + $0xe0] sm:$0xff]
  %v55 = vld [vmem:[%s1 + $0xe8] sm:$0xff]
  %v56 = vld [vmem:[%s1 + $0xf0] sm:$0xff]
  %v57 = vld [vmem:[%s1 + $0xf8] sm:$0xff]
  %v58 = vld [vmem:[%s2] sm:$0x3]
  %v60 = vlaneseq
  %v61 = vshrl.u32 %v60, 7
  %v62 = vsub.s32 0, %v61
  %v63 = vrot.slane %v58, %v62
  %v64 = vlaneseq
  %v65 = vshrl.u32 %v64, 7
  %v66 = vsub.s32 1, %v65
  %v67 = vrot.slane %v58, %v66
  %70 = vmatprep.subr.mxu0 %v27
  %71 = vmatpush1.msra.mxu0 %v26
  %72 = vmatprep.subr.mxu0 %v29
  %73 = vmatpush1.msra.mxu0 %v28
  %74 = vmatprep.subr.mxu0 %v31
  %75 = vmatpush1.msra.mxu0 %v30
  %76 = vmatprep.subr.mxu0 %v33
  %77 = vmatpush1.msra.mxu0 %v32
  %78 = vmatprep.subr.mxu0 %v35
  %79 = vmatpush1.msra.mxu0 %v34
  %80 = vmatprep.subr.mxu0 %v37
  %81 = vmatpush1.msra.mxu0 %v36
  %82 = vmatprep.subr.mxu0 %v39
  %83 = vmatpush1.msra.mxu0 %v38
  %84 = vmatprep.subr.mxu0 %v41
  %85 = vmatpush1.msra.mxu0 %v40
  %86 = vmatprep.subr.mxu0 %v43
  %87 = vmatpush1.msra.mxu0 %v42
  %88 = vmatprep.subr.mxu0 %v45
  %89 = vmatpush1.msra.mxu0 %v44
  %90 = vmatprep.subr.mxu0 %v47
  %91 = vmatpush1.msra.mxu0 %v46
  %92 = vmatprep.subr.mxu0 %v49
  %93 = vmatpush1.msra.mxu0 %v48
  %94 = vmatprep.subr.mxu0 %v51
  %95 = vmatpush1.msra.mxu0 %v50
  %96 = vmatprep.subr.mxu0 %v53
  %97 = vmatpush1.msra.mxu0 %v52
  %98 = vmatprep.subr.mxu0 %v55
  %99 = vmatpush1.msra.mxu0 %v54
  %100 = vmatprep.subr.mxu0 %v57
  %101 = vmatpush1.msra.mxu0 %v56
  %102 = vmatprep.subr.mxu0 0.0
  %103 = vmatpush1.msra.mxu0 0.0
  %104 = vmatprep.subr.mxu0 0.0
  %105 = vmatpush1.msra.mxu0 0.0
  %106 = vmatprep.subr.mxu0 0.0
  %107 = vmatpush1.msra.mxu0 0.0
  %108 = vmatprep.subr.mxu0 0.0
  %109 = vmatpush1.msra.mxu0 0.0
  %110 = vmatprep.subr.mxu0 0.0
  %111 = vmatpush1.msra.mxu0 0.0
  %112 = vmatprep.subr.mxu0 0.0
  %113 = vmatpush1.msra.mxu0 0.0
  %114 = vmatprep.subr.mxu0 0.0
  %115 = vmatpush1.msra.mxu0 0.0
  %116 = vmatprep.subr.mxu0 0.0
  %117 = vmatpush1.msra.mxu0 0.0
  %118 = vmatprep.subr.mxu0 0.0
  %119 = vmatpush1.msra.mxu0 0.0
  %120 = vmatprep.subr.mxu0 0.0
  %121 = vmatpush1.msra.mxu0 0.0
  %122 = vmatprep.subr.mxu0 0.0
  %123 = vmatpush1.msra.mxu0 0.0
  %124 = vmatprep.subr.mxu0 0.0
  %125 = vmatpush1.msra.mxu0 0.0
  %126 = vmatprep.subr.mxu0 0.0
  %127 = vmatpush1.msra.mxu0 0.0
  %128 = vmatprep.subr.mxu0 0.0
  %129 = vmatpush1.msra.mxu0 0.0
  %130 = vmatprep.subr.mxu0 0.0
  %131 = vmatpush1.msra.mxu0 0.0
  %132 = vmatprep.subr.mxu0 0.0
  %133 = vmatpush1.msra.mxu0 0.0
  %134 = vmatprep.mubr.f32.mxu0 0.0
  %135 = vmatmul.mubr.f32.gmra.mrb[0].mxu0 %v17
  %v136 = vpop.f32.mrb[0].mxu0
  %v137 = vadd.f32 %v63, %v136
  %v138 = vpop.f32.mrb[0].mxu0
  %139 = vmatprep.mubr.f32.mxu0 0.0
  %140 = vmatmul.mubr.f32.gmra.mrb[0].mxu0 %v18
  %v141 = vpop.f32.mrb[0].mxu0
  %v142 = vadd.f32 %v63, %v141
  %v143 = vpop.f32.mrb[0].mxu0
  %144 = vmatprep.mubr.f32.mxu0 0.0
  %145 = vmatmul.mubr.f32.gmra.mrb[0].mxu0 %v19
  %v146 = vpop.f32.mrb[0].mxu0
  %v147 = vadd.f32 %v63, %v146
  %v148 = vpop.f32.mrb[0].mxu0
  %149 = vmatprep.mubr.f32.mxu0 0.0
  %150 = vmatmul.mubr.f32.gmra.mrb[0].mxu0 %v20
  %v151 = vpop.f32.mrb[0].mxu0
  %v152 = vadd.f32 %v63, %v151
  %v153 = vpop.f32.mrb[0].mxu0
  %154 = vmatprep.mubr.f32.mxu0 0.0
  %155 = vmatmul.mubr.f32.gmra.mrb[0].mxu0 %v21
  %v156 = vpop.f32.mrb[0].mxu0
  %v157 = vadd.f32 %v63, %v156
  %v158 = vpop.f32.mrb[0].mxu0
  %159 = vmatprep.mubr.f32.mxu0 0.0
  %160 = vmatmul.mubr.f32.gmra.mrb[0].mxu0 %v22
  %v161 = vpop.f32.mrb[0].mxu0
  %v162 = vadd.f32 %v63, %v161
  %v163 = vpop.f32.mrb[0].mxu0
  %164 = vmatprep.mubr.f32.mxu0 0.0
  %165 = vmatmul.mubr.f32.gmra.mrb[0].mxu0 %v23
  %v166 = vpop.f32.mrb[0].mxu0
  %v167 = vadd.f32 %v63, %v166
  %v168 = vpop.f32.mrb[0].mxu0
  %169 = vmatprep.mubr.f32.mxu0 0.0
  %170 = vmatmul.mubr.f32.gmra.mrb[0].mxu0 %v24
  %v171 = vpop.f32.mrb[0].mxu0
  %v172 = vadd.f32 %v63, %v171
  %v173 = vpop.f32.mrb[0].mxu0
  %174 = vmatprep.mubr.f32.mxu0 0.0
  %175 = vmatmul.mubr.f32.gmra.mrb[0].mxu0 %v25
  %v176 = vpop.f32.mrb[0].mxu0
  %v177 = vadd.f32 %v63, %v176
  %v178 = vpop.f32.mrb[0].mxu0
  %v179 = vadd.f32 %v67, %v178
  %180 = vdwg.mxu0
  %v181 = vld [vmem:[%s3] sm:$0xff]
  %v182 = vld [vmem:[%s3 + $0x8] sm:$0xff]
  %v183 = vld [vmem:[%s3 + $0x10] sm:$0xff]
  %v184 = vld [vmem:[%s3 + $0x18] sm:$0xff]
  %v185 = vxor.u32 %v179, 2147483648
  %v186 = vmul.f32 %v185, 1.442695
  %v187 = vpow.pop %v186
  %v188 = vadd.f32 %v187, 1.0
  %v189 = vrcp.pop %v188
  %v190 = vmul.f32 1.0, %v189
  %v191 = vtanh.pop %v179
  %193 = vrot.lane.b32.xlu0 %v191, 32
  %v194 = vpop.permute.xlu0 %193
  %v196 = vmul.f32 %v190, %v194
  %v197 = vtanh.pop %v196
  %199 = vrot.lane.b32.xlu0 %v197, 64
  %v200 = vpop.permute.xlu0 %199
  %v202 = vmul.f32 %v190, %v200
  %vm203 = vcmask 261120
  %v205 = vsel %vm203, 0.0, 0
  %207 = vmatprep.subr.mxu0 0.0
  %208 = vmatpush1.msra.mxu0 %v181
  %209 = vmatprep.subr.mxu0 0.0
  %210 = vmatpush1.msra.mxu0 %v182
  %211 = vmatprep.subr.mxu0 0.0
  %212 = vmatpush1.msra.mxu0 %v183
  %213 = vmatprep.subr.mxu0 0.0
  %214 = vmatpush1.msra.mxu0 %v184
  %215 = vmatprep.subr.mxu0 0.0
  %216 = vmatpush1.msra.mxu0 0.0
  %217 = vmatprep.subr.mxu0 0.0
  %218 = vmatpush1.msra.mxu0 0.0
  %219 = vmatprep.subr.mxu0 0.0
  %220 = vmatpush1.msra.mxu0 0.0
  %221 = vmatprep.subr.mxu0 0.0
  %222 = vmatpush1.msra.mxu0 0.0
  %223 = vmatprep.subr.mxu0 0.0
  %224 = vmatpush1.msra.mxu0 0.0
  %225 = vmatprep.subr.mxu0 0.0
  %226 = vmatpush1.msra.mxu0 0.0
  %227 = vmatprep.subr.mxu0 0.0
  %228 = vmatpush1.msra.mxu0 0.0
  %229 = vmatprep.subr.mxu0 0.0
  %230 = vmatpush1.msra.mxu0 0.0
  %231 = vmatprep.subr.mxu0 0.0
  %232 = vmatpush1.msra.mxu0 0.0
  %233 = vmatprep.subr.mxu0 0.0
  %234 = vmatpush1.msra.mxu0 0.0
  %235 = vmatprep.subr.mxu0 0.0
  %236 = vmatpush1.msra.mxu0 0.0
  %237 = vmatprep.subr.mxu0 0.0
  %238 = vmatpush1.msra.mxu0 0.0
  %239 = vmatprep.subr.mxu0 0.0
  %240 = vmatpush1.msra.mxu0 0.0
  %241 = vmatprep.subr.mxu0 0.0
  %242 = vmatpush1.msra.mxu0 0.0
  %243 = vmatprep.subr.mxu0 0.0
  %244 = vmatpush1.msra.mxu0 0.0
  %245 = vmatprep.subr.mxu0 0.0
  %246 = vmatpush1.msra.mxu0 0.0
  %247 = vmatprep.subr.mxu0 0.0
  %248 = vmatpush1.msra.mxu0 0.0
  %249 = vmatprep.subr.mxu0 0.0
  %250 = vmatpush1.msra.mxu0 0.0
  %251 = vmatprep.subr.mxu0 0.0
  %252 = vmatpush1.msra.mxu0 0.0
  %253 = vmatprep.subr.mxu0 0.0
  %254 = vmatpush1.msra.mxu0 0.0
  %255 = vmatprep.subr.mxu0 0.0
  %256 = vmatpush1.msra.mxu0 0.0
  %257 = vmatprep.subr.mxu0 0.0
  %258 = vmatpush1.msra.mxu0 0.0
  %259 = vmatprep.subr.mxu0 0.0
  %260 = vmatpush1.msra.mxu0 0.0
  %261 = vmatprep.subr.mxu0 0.0
  %262 = vmatpush1.msra.mxu0 0.0
  %263 = vmatprep.subr.mxu0 0.0
  %264 = vmatpush1.msra.mxu0 0.0
  %265 = vmatprep.subr.mxu0 0.0
  %266 = vmatpush1.msra.mxu0 0.0
  %267 = vmatprep.subr.mxu0 0.0
  %268 = vmatpush1.msra.mxu0 0.0
  %269 = vmatprep.subr.mxu0 0.0
  %270 = vmatpush1.msra.mxu0 0.0
  %271 = vmatprep.mubr.f32.mxu0 0.0
  %272 = vmatmul.mubr.f32.gmra.mrb[0].mxu0 %v205
  %v273 = vpop.f32.mrb[0].mxu0
  %v274 = vadd.f32 0.0, %v273
  %v275 = vpop.f32.mrb[0].mxu0
  %276 = vdwg.mxu0
  %v277 = vadd.f32 %v137, %v274
  %v278 = vxor.u32 %v277, 2147483648
  %v279 = vmul.f32 %v278, 1.442695
  %v280 = vpow.pop %v279
  %v281 = vadd.f32 %v280, 1.0
  %v282 = vrcp.pop %v281
  %v283 = vmul.f32 1.0, %v282
  %v284 = vtanh.pop %v277
  %v285 = vmul.f32 %v283, 0.0
  %287 = vrot.lane.b32.xlu0 %v284, 32
  %v288 = vpop.permute.xlu0 %287
  %v290 = vmul.f32 %v283, %v288
  %292 = vrot.lane.b32.xlu0 %v290, 32
  %v293 = vpop.permute.xlu0 %292
  %v295 = vadd.f32 %v285, %v293
  %v296 = vtanh.pop %v295
  %298 = vrot.lane.b32.xlu0 %v296, 32
  %v299 = vpop.permute.xlu0 %298
  %v301 = vmul.f32 %v283, %v299
  %303 = vrot.lane.b32.xlu0 %v301, 64
  %v304 = vpop.permute.xlu0 %303
  %v305 = vsel %vm203, %v304, 0
  %307 = vmatprep.subr.mxu0 0.0
  %308 = vmatpush1.msra.mxu0 %v181
  %309 = vmatprep.subr.mxu0 0.0
  %310 = vmatpush1.msra.mxu0 %v182
  %311 = vmatprep.subr.mxu0 0.0
  %312 = vmatpush1.msra.mxu0 %v183
  %313 = vmatprep.subr.mxu0 0.0
  %314 = vmatpush1.msra.mxu0 %v184
  %315 = vmatprep.subr.mxu0 0.0
  %316 = vmatpush1.msra.mxu0 0.0
  %317 = vmatprep.subr.mxu0 0.0
  %318 = vmatpush1.msra.mxu0 0.0
  %319 = vmatprep.subr.mxu0 0.0
  %320 = vmatpush1.msra.mxu0 0.0
  %321 = vmatprep.subr.mxu0 0.0
  %322 = vmatpush1.msra.mxu0 0.0
  %323 = vmatprep.subr.mxu0 0.0
  %324 = vmatpush1.msra.mxu0 0.0
  %325 = vmatprep.subr.mxu0 0.0
  %326 = vmatpush1.msra.mxu0 0.0
  %327 = vmatprep.subr.mxu0 0.0
  %328 = vmatpush1.msra.mxu0 0.0
  %329 = vmatprep.subr.mxu0 0.0
  %330 = vmatpush1.msra.mxu0 0.0
  %331 = vmatprep.subr.mxu0 0.0
  %332 = vmatpush1.msra.mxu0 0.0
  %333 = vmatprep.subr.mxu0 0.0
  %334 = vmatpush1.msra.mxu0 0.0
  %335 = vmatprep.subr.mxu0 0.0
  %336 = vmatpush1.msra.mxu0 0.0
  %337 = vmatprep.subr.mxu0 0.0
  %338 = vmatpush1.msra.mxu0 0.0
  %339 = vmatprep.subr.mxu0 0.0
  %340 = vmatpush1.msra.mxu0 0.0
  %341 = vmatprep.subr.mxu0 0.0
  %342 = vmatpush1.msra.mxu0 0.0
  %343 = vmatprep.subr.mxu0 0.0
  %344 = vmatpush1.msra.mxu0 0.0
  %345 = vmatprep.subr.mxu0 0.0
  %346 = vmatpush1.msra.mxu0 0.0
  %347 = vmatprep.subr.mxu0 0.0
  %348 = vmatpush1.msra.mxu0 0.0
  %349 = vmatprep.subr.mxu0 0.0
  %350 = vmatpush1.msra.mxu0 0.0
  %351 = vmatprep.subr.mxu0 0.0
  %352 = vmatpush1.msra.mxu0 0.0
  %353 = vmatprep.subr.mxu0 0.0
  %354 = vmatpush1.msra.mxu0 0.0
  %355 = vmatprep.subr.mxu0 0.0
  %356 = vmatpush1.msra.mxu0 0.0
  %357 = vmatprep.subr.mxu0 0.0
  %358 = vmatpush1.msra.mxu0 0.0
  %359 = vmatprep.subr.mxu0 0.0
  %360 = vmatpush1.msra.mxu0 0.0
  %361 = vmatprep.subr.mxu0 0.0
  %362 = vmatpush1.msra.mxu0 0.0
  %363 = vmatprep.subr.mxu0 0.0
  %364 = vmatpush1.msra.mxu0 0.0
  %365 = vmatprep.subr.mxu0 0.0
  %366 = vmatpush1.msra.mxu0 0.0
  %367 = vmatprep.subr.mxu0 0.0
  %368 = vmatpush1.msra.mxu0 0.0
  %369 = vmatprep.subr.mxu0 0.0
  %370 = vmatpush1.msra.mxu0 0.0
  %371 = vmatprep.mubr.f32.mxu0 0.0
  %372 = vmatmul.mubr.f32.gmra.mrb[0].mxu0 %v305
  %v373 = vpop.f32.mrb[0].mxu0
  %v374 = vadd.f32 0.0, %v373
  %v375 = vpop.f32.mrb[0].mxu0
  %376 = vdwg.mxu0
  %v377 = vadd.f32 %v142, %v374
  %v378 = vxor.u32 %v377, 2147483648
  %v379 = vmul.f32 %v378, 1.442695
  %v380 = vpow.pop %v379
  %v381 = vadd.f32 %v380, 1.0
  %v382 = vrcp.pop %v381
  %v383 = vmul.f32 1.0, %v382
  %v384 = vtanh.pop %v377
  %v385 = vmul.f32 %v383, %v295
  %387 = vrot.lane.b32.xlu0 %v384, 32
  %v388 = vpop.permute.xlu0 %387
  %v390 = vmul.f32 %v383, %v388
  %392 = vrot.lane.b32.xlu0 %v390, 32
  %v393 = vpop.permute.xlu0 %392
  %v395 = vadd.f32 %v385, %v393
  %v396 = vtanh.pop %v395
  %398 = vrot.lane.b32.xlu0 %v396, 32
  %v399 = vpop.permute.xlu0 %398
  %v401 = vmul.f32 %v383, %v399
  %403 = vrot.lane.b32.xlu0 %v401, 64
  %v404 = vpop.permute.xlu0 %403
  %v405 = vsel %vm203, %v404, 0
  %407 = vmatprep.subr.mxu0 0.0
  %408 = vmatpush1.msra.mxu0 %v181
  %409 = vmatprep.subr.mxu0 0.0
  %410 = vmatpush1.msra.mxu0 %v182
  %411 = vmatprep.subr.mxu0 0.0
  %412 = vmatpush1.msra.mxu0 %v183
  %413 = vmatprep.subr.mxu0 0.0
  %414 = vmatpush1.msra.mxu0 %v184
  %415 = vmatprep.subr.mxu0 0.0
  %416 = vmatpush1.msra.mxu0 0.0
  %417 = vmatprep.subr.mxu0 0.0
  %418 = vmatpush1.msra.mxu0 0.0
  %419 = vmatprep.subr.mxu0 0.0
  %420 = vmatpush1.msra.mxu0 0.0
  %421 = vmatprep.subr.mxu0 0.0
  %422 = vmatpush1.msra.mxu0 0.0
  %423 = vmatprep.subr.mxu0 0.0
  %424 = vmatpush1.msra.mxu0 0.0
  %425 = vmatprep.subr.mxu0 0.0
  %426 = vmatpush1.msra.mxu0 0.0
  %427 = vmatprep.subr.mxu0 0.0
  %428 = vmatpush1.msra.mxu0 0.0
  %429 = vmatprep.subr.mxu0 0.0
  %430 = vmatpush1.msra.mxu0 0.0
  %431 = vmatprep.subr.mxu0 0.0
  %432 = vmatpush1.msra.mxu0 0.0
  %433 = vmatprep.subr.mxu0 0.0
  %434 = vmatpush1.msra.mxu0 0.0
  %435 = vmatprep.subr.mxu0 0.0
  %436 = vmatpush1.msra.mxu0 0.0
  %437 = vmatprep.subr.mxu0 0.0
  %438 = vmatpush1.msra.mxu0 0.0
  %439 = vmatprep.subr.mxu0 0.0
  %440 = vmatpush1.msra.mxu0 0.0
  %441 = vmatprep.subr.mxu0 0.0
  %442 = vmatpush1.msra.mxu0 0.0
  %443 = vmatprep.subr.mxu0 0.0
  %444 = vmatpush1.msra.mxu0 0.0
  %445 = vmatprep.subr.mxu0 0.0
  %446 = vmatpush1.msra.mxu0 0.0
  %447 = vmatprep.subr.mxu0 0.0
  %448 = vmatpush1.msra.mxu0 0.0
  %449 = vmatprep.subr.mxu0 0.0
  %450 = vmatpush1.msra.mxu0 0.0
  %451 = vmatprep.subr.mxu0 0.0
  %452 = vmatpush1.msra.mxu0 0.0
  %453 = vmatprep.subr.mxu0 0.0
  %454 = vmatpush1.msra.mxu0 0.0
  %455 = vmatprep.subr.mxu0 0.0
  %456 = vmatpush1.msra.mxu0 0.0
  %457 = vmatprep.subr.mxu0 0.0
  %458 = vmatpush1.msra.mxu0 0.0
  %459 = vmatprep.subr.mxu0 0.0
  %460 = vmatpush1.msra.mxu0 0.0
  %461 = vmatprep.subr.mxu0 0.0
  %462 = vmatpush1.msra.mxu0 0.0
  %463 = vmatprep.subr.mxu0 0.0
  %464 = vmatpush1.msra.mxu0 0.0
  %465 = vmatprep.subr.mxu0 0.0
  %466 = vmatpush1.msra.mxu0 0.0
  %467 = vmatprep.subr.mxu0 0.0
  %468 = vmatpush1.msra.mxu0 0.0
  %469 = vmatprep.subr.mxu0 0.0
  %470 = vmatpush1.msra.mxu0 0.0
  %471 = vmatprep.mubr.f32.mxu0 0.0
  %472 = vmatmul.mubr.f32.gmra.mrb[0].mxu0 %v405
  %v473 = vpop.f32.mrb[0].mxu0
  %v474 = vadd.f32 0.0, %v473
  %v475 = vpop.f32.mrb[0].mxu0
  %476 = vdwg.mxu0
  %v477 = vadd.f32 %v147, %v474
  %v478 = vxor.u32 %v477, 2147483648
  %v479 = vmul.f32 %v478, 1.442695
  %v480 = vpow.pop %v479
  %v481 = vadd.f32 %v480, 1.0
  %v482 = vrcp.pop %v481
  %v483 = vmul.f32 1.0, %v482
  %v484 = vtanh.pop %v477
  %v485 = vmul.f32 %v483, %v395
  %487 = vrot.lane.b32.xlu0 %v484, 32
  %v488 = vpop.permute.xlu0 %487
  %v490 = vmul.f32 %v483, %v488
  %492 = vrot.lane.b32.xlu0 %v490, 32
  %v493 = vpop.permute.xlu0 %492
  %v495 = vadd.f32 %v485, %v493
  %v496 = vtanh.pop %v495
  %498 = vrot.lane.b32.xlu0 %v496, 32
  %v499 = vpop.permute.xlu0 %498
  %v501 = vmul.f32 %v483, %v499
  %503 = vrot.lane.b32.xlu0 %v501, 64
  %v504 = vpop.permute.xlu0 %503
  %v505 = vsel %vm203, %v504, 0
  %507 = vmatprep.subr.mxu0 0.0
  %508 = vmatpush1.msra.mxu0 %v181
  %509 = vmatprep.subr.mxu0 0.0
  %510 = vmatpush1.msra.mxu0 %v182
  %511 = vmatprep.subr.mxu0 0.0
  %512 = vmatpush1.msra.mxu0 %v183
  %513 = vmatprep.subr.mxu0 0.0
  %514 = vmatpush1.msra.mxu0 %v184
  %515 = vmatprep.subr.mxu0 0.0
  %516 = vmatpush1.msra.mxu0 0.0
  %517 = vmatprep.subr.mxu0 0.0
  %518 = vmatpush1.msra.mxu0 0.0
  %519 = vmatprep.subr.mxu0 0.0
  %520 = vmatpush1.msra.mxu0 0.0
  %521 = vmatprep.subr.mxu0 0.0
  %522 = vmatpush1.msra.mxu0 0.0
  %523 = vmatprep.subr.mxu0 0.0
  %524 = vmatpush1.msra.mxu0 0.0
  %525 = vmatprep.subr.mxu0 0.0
  %526 = vmatpush1.msra.mxu0 0.0
  %527 = vmatprep.subr.mxu0 0.0
  %528 = vmatpush1.msra.mxu0 0.0
  %529 = vmatprep.subr.mxu0 0.0
  %530 = vmatpush1.msra.mxu0 0.0
  %531 = vmatprep.subr.mxu0 0.0
  %532 = vmatpush1.msra.mxu0 0.0
  %533 = vmatprep.subr.mxu0 0.0
  %534 = vmatpush1.msra.mxu0 0.0
  %535 = vmatprep.subr.mxu0 0.0
  %536 = vmatpush1.msra.mxu0 0.0
  %537 = vmatprep.subr.mxu0 0.0
  %538 = vmatpush1.msra.mxu0 0.0
  %539 = vmatprep.subr.mxu0 0.0
  %540 = vmatpush1.msra.mxu0 0.0
  %541 = vmatprep.subr.mxu0 0.0
  %542 = vmatpush1.msra.mxu0 0.0
  %543 = vmatprep.subr.mxu0 0.0
  %544 = vmatpush1.msra.mxu0 0.0
  %545 = vmatprep.subr.mxu0 0.0
  %546 = vmatpush1.msra.mxu0 0.0
  %547 = vmatprep.subr.mxu0 0.0
  %548 = vmatpush1.msra.mxu0 0.0
  %549 = vmatprep.subr.mxu0 0.0
  %550 = vmatpush1.msra.mxu0 0.0
  %551 = vmatprep.subr.mxu0 0.0
  %552 = vmatpush1.msra.mxu0 0.0
  %553 = vmatprep.subr.mxu0 0.0
  %554 = vmatpush1.msra.mxu0 0.0
  %555 = vmatprep.subr.mxu0 0.0
  %556 = vmatpush1.msra.mxu0 0.0
  %557 = vmatprep.subr.mxu0 0.0
  %558 = vmatpush1.msra.mxu0 0.0
  %559 = vmatprep.subr.mxu0 0.0
  %560 = vmatpush1.msra.mxu0 0.0
  %561 = vmatprep.subr.mxu0 0.0
  %562 = vmatpush1.msra.mxu0 0.0
  %563 = vmatprep.subr.mxu0 0.0
  %564 = vmatpush1.msra.mxu0 0.0
  %565 = vmatprep.subr.mxu0 0.0
  %566 = vmatpush1.msra.mxu0 0.0
  %567 = vmatprep.subr.mxu0 0.0
  %568 = vmatpush1.msra.mxu0 0.0
  %569 = vmatprep.subr.mxu0 0.0
  %570 = vmatpush1.msra.mxu0 0.0
  %571 = vmatprep.mubr.f32.mxu0 0.0
  %572 = vmatmul.mubr.f32.gmra.mrb[0].mxu0 %v505
  %v573 = vpop.f32.mrb[0].mxu0
  %v574 = vadd.f32 0.0, %v573
  %v575 = vpop.f32.mrb[0].mxu0
  %576 = vdwg.mxu0
  %v577 = vadd.f32 %v152, %v574
  %v578 = vxor.u32 %v577, 2147483648
  %v579 = vmul.f32 %v578, 1.442695
  %v580 = vpow.pop %v579
  %v581 = vadd.f32 %v580, 1.0
  %v582 = vrcp.pop %v581
  %v583 = vmul.f32 1.0, %v582
  %v584 = vtanh.pop %v577
  %v585 = vmul.f32 %v583, %v495
  %587 = vrot.lane.b32.xlu0 %v584, 32
  %v588 = vpop.permute.xlu0 %587
  %v590 = vmul.f32 %v583, %v588
  %592 = vrot.lane.b32.xlu0 %v590, 32
  %v593 = vpop.permute.xlu0 %592
  %v595 = vadd.f32 %v585, %v593
  %v596 = vtanh.pop %v595
  %598 = vrot.lane.b32.xlu0 %v596, 32
  %v599 = vpop.permute.xlu0 %598
  %v601 = vmul.f32 %v583, %v599
  %603 = vrot.lane.b32.xlu0 %v601, 64
  %v604 = vpop.permute.xlu0 %603
  %v605 = vsel %vm203, %v604, 0
  %607 = vmatprep.subr.mxu0 0.0
  %608 = vmatpush1.msra.mxu0 %v181
  %609 = vmatprep.subr.mxu0 0.0
  %610 = vmatpush1.msra.mxu0 %v182
  %611 = vmatprep.subr.mxu0 0.0
  %612 = vmatpush1.msra.mxu0 %v183
  %613 = vmatprep.subr.mxu0 0.0
  %614 = vmatpush1.msra.mxu0 %v184
  %615 = vmatprep.subr.mxu0 0.0
  %616 = vmatpush1.msra.mxu0 0.0
  %617 = vmatprep.subr.mxu0 0.0
  %618 = vmatpush1.msra.mxu0 0.0
  %619 = vmatprep.subr.mxu0 0.0
  %620 = vmatpush1.msra.mxu0 0.0
  %621 = vmatprep.subr.mxu0 0.0
  %622 = vmatpush1.msra.mxu0 0.0
  %623 = vmatprep.subr.mxu0 0.0
  %624 = vmatpush1.msra.mxu0 0.0
  %625 = vmatprep.subr.mxu0 0.0
  %626 = vmatpush1.msra.mxu0 0.0
  %627 = vmatprep.subr.mxu0 0.0
  %628 = vmatpush1.msra.mxu0 0.0
  %629 = vmatprep.subr.mxu0 0.0
  %630 = vmatpush1.msra.mxu0 0.0
  %631 = vmatprep.subr.mxu0 0.0
  %632 = vmatpush1.msra.mxu0 0.0
  %633 = vmatprep.subr.mxu0 0.0
  %634 = vmatpush1.msra.mxu0 0.0
  %635 = vmatprep.subr.mxu0 0.0
  %636 = vmatpush1.msra.mxu0 0.0
  %637 = vmatprep.subr.mxu0 0.0
  %638 = vmatpush1.msra.mxu0 0.0
  %639 = vmatprep.subr.mxu0 0.0
  %640 = vmatpush1.msra.mxu0 0.0
  %641 = vmatprep.subr.mxu0 0.0
  %642 = vmatpush1.msra.mxu0 0.0
  %643 = vmatprep.subr.mxu0 0.0
  %644 = vmatpush1.msra.mxu0 0.0
  %645 = vmatprep.subr.mxu0 0.0
  %646 = vmatpush1.msra.mxu0 0.0
  %647 = vmatprep.subr.mxu0 0.0
  %648 = vmatpush1.msra.mxu0 0.0
  %649 = vmatprep.subr.mxu0 0.0
  %650 = vmatpush1.msra.mxu0 0.0
  %651 = vmatprep.subr.mxu0 0.0
  %652 = vmatpush1.msra.mxu0 0.0
  %653 = vmatprep.subr.mxu0 0.0
  %654 = vmatpush1.msra.mxu0 0.0
  %655 = vmatprep.subr.mxu0 0.0
  %656 = vmatpush1.msra.mxu0 0.0
  %657 = vmatprep.subr.mxu0 0.0
  %658 = vmatpush1.msra.mxu0 0.0
  %659 = vmatprep.subr.mxu0 0.0
  %660 = vmatpush1.msra.mxu0 0.0
  %661 = vmatprep.subr.mxu0 0.0
  %662 = vmatpush1.msra.mxu0 0.0
  %663 = vmatprep.subr.mxu0 0.0
  %664 = vmatpush1.msra.mxu0 0.0
  %665 = vmatprep.subr.mxu0 0.0
  %666 = vmatpush1.msra.mxu0 0.0
  %667 = vmatprep.subr.mxu0 0.0
  %668 = vmatpush1.msra.mxu0 0.0
  %669 = vmatprep.subr.mxu0 0.0
  %670 = vmatpush1.msra.mxu0 0.0
  %671 = vmatprep.mubr.f32.mxu0 0.0
  %672 = vmatmul.mubr.f32.gmra.mrb[0].mxu0 %v605
  %v673 = vpop.f32.mrb[0].mxu0
  %v674 = vadd.f32 0.0, %v673
  %v675 = vpop.f32.mrb[0].mxu0
  %676 = vdwg.mxu0
  %v677 = vadd.f32 %v157, %v674
  %v678 = vxor.u32 %v677, 2147483648
  %v679 = vmul.f32 %v678, 1.442695
  %v680 = vpow.pop %v679
  %v681 = vadd.f32 %v680, 1.0
  %v682 = vrcp.pop %v681
  %v683 = vmul.f32 1.0, %v682
  %v684 = vtanh.pop %v677
  %v685 = vmul.f32 %v683, %v595
  %687 = vrot.lane.b32.xlu0 %v684, 32
  %v688 = vpop.permute.xlu0 %687
  %v690 = vmul.f32 %v683, %v688
  %692 = vrot.lane.b32.xlu0 %v690, 32
  %v693 = vpop.permute.xlu0 %692
  %v695 = vadd.f32 %v685, %v693
  %v696 = vtanh.pop %v695
  %698 = vrot.lane.b32.xlu0 %v696, 32
  %v699 = vpop.permute.xlu0 %698
  %v701 = vmul.f32 %v683, %v699
  %703 = vrot.lane.b32.xlu0 %v701, 64
  %v704 = vpop.permute.xlu0 %703
  %v705 = vsel %vm203, %v704, 0
  %707 = vmatprep.subr.mxu0 0.0
  %708 = vmatpush1.msra.mxu0 %v181
  %709 = vmatprep.subr.mxu0 0.0
  %710 = vmatpush1.msra.mxu0 %v182
  %711 = vmatprep.subr.mxu0 0.0
  %712 = vmatpush1.msra.mxu0 %v183
  %713 = vmatprep.subr.mxu0 0.0
  %714 = vmatpush1.msra.mxu0 %v184
  %715 = vmatprep.subr.mxu0 0.0
  %716 = vmatpush1.msra.mxu0 0.0
  %717 = vmatprep.subr.mxu0 0.0
  %718 = vmatpush1.msra.mxu0 0.0
  %719 = vmatprep.subr.mxu0 0.0
  %720 = vmatpush1.msra.mxu0 0.0
  %721 = vmatprep.subr.mxu0 0.0
  %722 = vmatpush1.msra.mxu0 0.0
  %723 = vmatprep.subr.mxu0 0.0
  %724 = vmatpush1.msra.mxu0 0.0
  %725 = vmatprep.subr.mxu0 0.0
  %726 = vmatpush1.msra.mxu0 0.0
  %727 = vmatprep.subr.mxu0 0.0
  %728 = vmatpush1.msra.mxu0 0.0
  %729 = vmatprep.subr.mxu0 0.0
  %730 = vmatpush1.msra.mxu0 0.0
  %731 = vmatprep.subr.mxu0 0.0
  %732 = vmatpush1.msra.mxu0 0.0
  %733 = vmatprep.subr.mxu0 0.0
  %734 = vmatpush1.msra.mxu0 0.0
  %735 = vmatprep.subr.mxu0 0.0
  %736 = vmatpush1.msra.mxu0 0.0
  %737 = vmatprep.subr.mxu0 0.0
  %738 = vmatpush1.msra.mxu0 0.0
  %739 = vmatprep.subr.mxu0 0.0
  %740 = vmatpush1.msra.mxu0 0.0
  %741 = vmatprep.subr.mxu0 0.0
  %742 = vmatpush1.msra.mxu0 0.0
  %743 = vmatprep.subr.mxu0 0.0
  %744 = vmatpush1.msra.mxu0 0.0
  %745 = vmatprep.subr.mxu0 0.0
  %746 = vmatpush1.msra.mxu0 0.0
  %747 = vmatprep.subr.mxu0 0.0
  %748 = vmatpush1.msra.mxu0 0.0
  %749 = vmatprep.subr.mxu0 0.0
  %750 = vmatpush1.msra.mxu0 0.0
  %751 = vmatprep.subr.mxu0 0.0
  %752 = vmatpush1.msra.mxu0 0.0
  %753 = vmatprep.subr.mxu0 0.0
  %754 = vmatpush1.msra.mxu0 0.0
  %755 = vmatprep.subr.mxu0 0.0
  %756 = vmatpush1.msra.mxu0 0.0
  %757 = vmatprep.subr.mxu0 0.0
  %758 = vmatpush1.msra.mxu0 0.0
  %759 = vmatprep.subr.mxu0 0.0
  %760 = vmatpush1.msra.mxu0 0.0
  %761 = vmatprep.subr.mxu0 0.0
  %762 = vmatpush1.msra.mxu0 0.0
  %763 = vmatprep.subr.mxu0 0.0
  %764 = vmatpush1.msra.mxu0 0.0
  %765 = vmatprep.subr.mxu0 0.0
  %766 = vmatpush1.msra.mxu0 0.0
  %767 = vmatprep.subr.mxu0 0.0
  %768 = vmatpush1.msra.mxu0 0.0
  %769 = vmatprep.subr.mxu0 0.0
  %770 = vmatpush1.msra.mxu0 0.0
  %771 = vmatprep.mubr.f32.mxu0 0.0
  %772 = vmatmul.mubr.f32.gmra.mrb[0].mxu0 %v705
  %v773 = vpop.f32.mrb[0].mxu0
  %v774 = vadd.f32 0.0, %v773
  %v775 = vpop.f32.mrb[0].mxu0
  %776 = vdwg.mxu0
  %v777 = vadd.f32 %v162, %v774
  %v778 = vxor.u32 %v777, 2147483648
  %v779 = vmul.f32 %v778, 1.442695
  %v780 = vpow.pop %v779
  %v781 = vadd.f32 %v780, 1.0
  %v782 = vrcp.pop %v781
  %v783 = vmul.f32 1.0, %v782
  %v784 = vtanh.pop %v777
  %v785 = vmul.f32 %v783, %v695
  %787 = vrot.lane.b32.xlu0 %v784, 32
  %v788 = vpop.permute.xlu0 %787
  %v790 = vmul.f32 %v783, %v788
  %792 = vrot.lane.b32.xlu0 %v790, 32
  %v793 = vpop.permute.xlu0 %792
  %v795 = vadd.f32 %v785, %v793
  %v796 = vtanh.pop %v795
  %798 = vrot.lane.b32.xlu0 %v796, 32
  %v799 = vpop.permute.xlu0 %798
  %v801 = vmul.f32 %v783, %v799
  %803 = vrot.lane.b32.xlu0 %v801, 64
  %v804 = vpop.permute.xlu0 %803
  %v805 = vsel %vm203, %v804, 0
  %807 = vmatprep.subr.mxu0 0.0
  %808 = vmatpush1.msra.mxu0 %v181
  %809 = vmatprep.subr.mxu0 0.0
  %810 = vmatpush1.msra.mxu0 %v182
  %811 = vmatprep.subr.mxu0 0.0
  %812 = vmatpush1.msra.mxu0 %v183
  %813 = vmatprep.subr.mxu0 0.0
  %814 = vmatpush1.msra.mxu0 %v184
  %815 = vmatprep.subr.mxu0 0.0
  %816 = vmatpush1.msra.mxu0 0.0
  %817 = vmatprep.subr.mxu0 0.0
  %818 = vmatpush1.msra.mxu0 0.0
  %819 = vmatprep.subr.mxu0 0.0
  %820 = vmatpush1.msra.mxu0 0.0
  %821 = vmatprep.subr.mxu0 0.0
  %822 = vmatpush1.msra.mxu0 0.0
  %823 = vmatprep.subr.mxu0 0.0
  %824 = vmatpush1.msra.mxu0 0.0
  %825 = vmatprep.subr.mxu0 0.0
  %826 = vmatpush1.msra.mxu0 0.0
  %827 = vmatprep.subr.mxu0 0.0
  %828 = vmatpush1.msra.mxu0 0.0
  %829 = vmatprep.subr.mxu0 0.0
  %830 = vmatpush1.msra.mxu0 0.0
  %831 = vmatprep.subr.mxu0 0.0
  %832 = vmatpush1.msra.mxu0 0.0
  %833 = vmatprep.subr.mxu0 0.0
  %834 = vmatpush1.msra.mxu0 0.0
  %835 = vmatprep.subr.mxu0 0.0
  %836 = vmatpush1.msra.mxu0 0.0
  %837 = vmatprep.subr.mxu0 0.0
  %838 = vmatpush1.msra.mxu0 0.0
  %839 = vmatprep.subr.mxu0 0.0
  %840 = vmatpush1.msra.mxu0 0.0
  %841 = vmatprep.subr.mxu0 0.0
  %842 = vmatpush1.msra.mxu0 0.0
  %843 = vmatprep.subr.mxu0 0.0
  %844 = vmatpush1.msra.mxu0 0.0
  %845 = vmatprep.subr.mxu0 0.0
  %846 = vmatpush1.msra.mxu0 0.0
  %847 = vmatprep.subr.mxu0 0.0
  %848 = vmatpush1.msra.mxu0 0.0
  %849 = vmatprep.subr.mxu0 0.0
  %850 = vmatpush1.msra.mxu0 0.0
  %851 = vmatprep.subr.mxu0 0.0
  %852 = vmatpush1.msra.mxu0 0.0
  %853 = vmatprep.subr.mxu0 0.0
  %854 = vmatpush1.msra.mxu0 0.0
  %855 = vmatprep.subr.mxu0 0.0
  %856 = vmatpush1.msra.mxu0 0.0
  %857 = vmatprep.subr.mxu0 0.0
  %858 = vmatpush1.msra.mxu0 0.0
  %859 = vmatprep.subr.mxu0 0.0
  %860 = vmatpush1.msra.mxu0 0.0
  %861 = vmatprep.subr.mxu0 0.0
  %862 = vmatpush1.msra.mxu0 0.0
  %863 = vmatprep.subr.mxu0 0.0
  %864 = vmatpush1.msra.mxu0 0.0
  %865 = vmatprep.subr.mxu0 0.0
  %866 = vmatpush1.msra.mxu0 0.0
  %867 = vmatprep.subr.mxu0 0.0
  %868 = vmatpush1.msra.mxu0 0.0
  %869 = vmatprep.subr.mxu0 0.0
  %870 = vmatpush1.msra.mxu0 0.0
  %871 = vmatprep.mubr.f32.mxu0 0.0
  %872 = vmatmul.mubr.f32.gmra.mrb[0].mxu0 %v805
  %v873 = vpop.f32.mrb[0].mxu0
  %v874 = vadd.f32 0.0, %v873
  %v875 = vpop.f32.mrb[0].mxu0
  %876 = vdwg.mxu0
  %v877 = vadd.f32 %v167, %v874
  %v878 = vxor.u32 %v877, 2147483648
  %v879 = vmul.f32 %v878, 1.442695
  %v880 = vpow.pop %v879
  %v881 = vadd.f32 %v880, 1.0
  %v882 = vrcp.pop %v881
  %v883 = vmul.f32 1.0, %v882
  %v884 = vtanh.pop %v877
  %v885 = vmul.f32 %v883, %v795
  %887 = vrot.lane.b32.xlu0 %v884, 32
  %v888 = vpop.permute.xlu0 %887
  %v890 = vmul.f32 %v883, %v888
  %892 = vrot.lane.b32.xlu0 %v890, 32
  %v893 = vpop.permute.xlu0 %892
  %v895 = vadd.f32 %v885, %v893
  %v896 = vtanh.pop %v895
  %898 = vrot.lane.b32.xlu0 %v896, 32
  %v899 = vpop.permute.xlu0 %898
  %v901 = vmul.f32 %v883, %v899
  %903 = vrot.lane.b32.xlu0 %v901, 64
  %v904 = vpop.permute.xlu0 %903
  %v905 = vsel %vm203, %v904, 0
  %907 = vmatprep.subr.mxu0 0.0
  %908 = vmatpush1.msra.mxu0 %v181
  %909 = vmatprep.subr.mxu0 0.0
  %910 = vmatpush1.msra.mxu0 %v182
  %911 = vmatprep.subr.mxu0 0.0
  %912 = vmatpush1.msra.mxu0 %v183
  %913 = vmatprep.subr.mxu0 0.0
  %914 = vmatpush1.msra.mxu0 %v184
  %915 = vmatprep.subr.mxu0 0.0
  %916 = vmatpush1.msra.mxu0 0.0
  %917 = vmatprep.subr.mxu0 0.0
  %918 = vmatpush1.msra.mxu0 0.0
  %919 = vmatprep.subr.mxu0 0.0
  %920 = vmatpush1.msra.mxu0 0.0
  %921 = vmatprep.subr.mxu0 0.0
  %922 = vmatpush1.msra.mxu0 0.0
  %923 = vmatprep.subr.mxu0 0.0
  %924 = vmatpush1.msra.mxu0 0.0
  %925 = vmatprep.subr.mxu0 0.0
  %926 = vmatpush1.msra.mxu0 0.0
  %927 = vmatprep.subr.mxu0 0.0
  %928 = vmatpush1.msra.mxu0 0.0
  %929 = vmatprep.subr.mxu0 0.0
  %930 = vmatpush1.msra.mxu0 0.0
  %931 = vmatprep.subr.mxu0 0.0
  %932 = vmatpush1.msra.mxu0 0.0
  %933 = vmatprep.subr.mxu0 0.0
  %934 = vmatpush1.msra.mxu0 0.0
  %935 = vmatprep.subr.mxu0 0.0
  %936 = vmatpush1.msra.mxu0 0.0
  %937 = vmatprep.subr.mxu0 0.0
  %938 = vmatpush1.msra.mxu0 0.0
  %939 = vmatprep.subr.mxu0 0.0
  %940 = vmatpush1.msra.mxu0 0.0
  %941 = vmatprep.subr.mxu0 0.0
  %942 = vmatpush1.msra.mxu0 0.0
  %943 = vmatprep.subr.mxu0 0.0
  %944 = vmatpush1.msra.mxu0 0.0
  %945 = vmatprep.subr.mxu0 0.0
  %946 = vmatpush1.msra.mxu0 0.0
  %947 = vmatprep.subr.mxu0 0.0
  %948 = vmatpush1.msra.mxu0 0.0
  %949 = vmatprep.subr.mxu0 0.0
  %950 = vmatpush1.msra.mxu0 0.0
  %951 = vmatprep.subr.mxu0 0.0
  %952 = vmatpush1.msra.mxu0 0.0
  %953 = vmatprep.subr.mxu0 0.0
  %954 = vmatpush1.msra.mxu0 0.0
  %955 = vmatprep.subr.mxu0 0.0
  %956 = vmatpush1.msra.mxu0 0.0
  %957 = vmatprep.subr.mxu0 0.0
  %958 = vmatpush1.msra.mxu0 0.0
  %959 = vmatprep.subr.mxu0 0.0
  %960 = vmatpush1.msra.mxu0 0.0
  %961 = vmatprep.subr.mxu0 0.0
  %962 = vmatpush1.msra.mxu0 0.0
  %963 = vmatprep.subr.mxu0 0.0
  %964 = vmatpush1.msra.mxu0 0.0
  %965 = vmatprep.subr.mxu0 0.0
  %966 = vmatpush1.msra.mxu0 0.0
  %967 = vmatprep.subr.mxu0 0.0
  %968 = vmatpush1.msra.mxu0 0.0
  %969 = vmatprep.subr.mxu0 0.0
  %970 = vmatpush1.msra.mxu0 0.0
  %971 = vmatprep.mubr.f32.mxu0 0.0
  %972 = vmatmul.mubr.f32.gmra.mrb[0].mxu0 %v905
  %v973 = vpop.f32.mrb[0].mxu0
  %v974 = vadd.f32 0.0, %v973
  %v975 = vpop.f32.mrb[0].mxu0
  %976 = vdwg.mxu0
  %v977 = vadd.f32 %v172, %v974
  %v978 = vxor.u32 %v977, 2147483648
  %v979 = vmul.f32 %v978, 1.442695
  %v980 = vpow.pop %v979
  %v981 = vadd.f32 %v980, 1.0
  %v982 = vrcp.pop %v981
  %v983 = vmul.f32 1.0, %v982
  %v984 = vtanh.pop %v977
  %v985 = vmul.f32 %v983, %v895
  %987 = vrot.lane.b32.xlu0 %v984, 32
  %v988 = vpop.permute.xlu0 %987
  %v990 = vmul.f32 %v983, %v988
  %992 = vrot.lane.b32.xlu0 %v990, 32
  %v993 = vpop.permute.xlu0 %992
  %v995 = vadd.f32 %v985, %v993
  %v996 = vtanh.pop %v995
  %998 = vrot.lane.b32.xlu0 %v996, 32
  %v999 = vpop.permute.xlu0 %998
  %v1001 = vmul.f32 %v983, %v999
  %1003 = vrot.lane.b32.xlu0 %v1001, 64
  %v1004 = vpop.permute.xlu0 %1003
  %v1005 = vsel %vm203, %v1004, 0
  %1007 = vmatprep.subr.mxu0 0.0
  %1008 = vmatpush1.msra.mxu0 %v181
  %1009 = vmatprep.subr.mxu0 0.0
  %1010 = vmatpush1.msra.mxu0 %v182
  %1011 = vmatprep.subr.mxu0 0.0
  %1012 = vmatpush1.msra.mxu0 %v183
  %1013 = vmatprep.subr.mxu0 0.0
  %1014 = vmatpush1.msra.mxu0 %v184
  %1015 = vmatprep.subr.mxu0 0.0
  %1016 = vmatpush1.msra.mxu0 0.0
  %1017 = vmatprep.subr.mxu0 0.0
  %1018 = vmatpush1.msra.mxu0 0.0
  %1019 = vmatprep.subr.mxu0 0.0
  %1020 = vmatpush1.msra.mxu0 0.0
  %1021 = vmatprep.subr.mxu0 0.0
  %1022 = vmatpush1.msra.mxu0 0.0
  %1023 = vmatprep.subr.mxu0 0.0
  %1024 = vmatpush1.msra.mxu0 0.0
  %1025 = vmatprep.subr.mxu0 0.0
  %1026 = vmatpush1.msra.mxu0 0.0
  %1027 = vmatprep.subr.mxu0 0.0
  %1028 = vmatpush1.msra.mxu0 0.0
  %1029 = vmatprep.subr.mxu0 0.0
  %1030 = vmatpush1.msra.mxu0 0.0
  %1031 = vmatprep.subr.mxu0 0.0
  %1032 = vmatpush1.msra.mxu0 0.0
  %1033 = vmatprep.subr.mxu0 0.0
  %1034 = vmatpush1.msra.mxu0 0.0
  %1035 = vmatprep.subr.mxu0 0.0
  %1036 = vmatpush1.msra.mxu0 0.0
  %1037 = vmatprep.subr.mxu0 0.0
  %1038 = vmatpush1.msra.mxu0 0.0
  %1039 = vmatprep.subr.mxu0 0.0
  %1040 = vmatpush1.msra.mxu0 0.0
  %1041 = vmatprep.subr.mxu0 0.0
  %1042 = vmatpush1.msra.mxu0 0.0
  %1043 = vmatprep.subr.mxu0 0.0
  %1044 = vmatpush1.msra.mxu0 0.0
  %1045 = vmatprep.subr.mxu0 0.0
  %1046 = vmatpush1.msra.mxu0 0.0
  %1047 = vmatprep.subr.mxu0 0.0
  %1048 = vmatpush1.msra.mxu0 0.0
  %1049 = vmatprep.subr.mxu0 0.0
  %1050 = vmatpush1.msra.mxu0 0.0
  %1051 = vmatprep.subr.mxu0 0.0
  %1052 = vmatpush1.msra.mxu0 0.0
  %1053 = vmatprep.subr.mxu0 0.0
  %1054 = vmatpush1.msra.mxu0 0.0
  %1055 = vmatprep.subr.mxu0 0.0
  %1056 = vmatpush1.msra.mxu0 0.0
  %1057 = vmatprep.subr.mxu0 0.0
  %1058 = vmatpush1.msra.mxu0 0.0
  %1059 = vmatprep.subr.mxu0 0.0
  %1060 = vmatpush1.msra.mxu0 0.0
  %1061 = vmatprep.subr.mxu0 0.0
  %1062 = vmatpush1.msra.mxu0 0.0
  %1063 = vmatprep.subr.mxu0 0.0
  %1064 = vmatpush1.msra.mxu0 0.0
  %1065 = vmatprep.subr.mxu0 0.0
  %1066 = vmatpush1.msra.mxu0 0.0
  %1067 = vmatprep.subr.mxu0 0.0
  %1068 = vmatpush1.msra.mxu0 0.0
  %1069 = vmatprep.subr.mxu0 0.0
  %1070 = vmatpush1.msra.mxu0 0.0
  %1071 = vmatprep.mubr.f32.mxu0 0.0
  %1072 = vmatmul.mubr.f32.gmra.mrb[0].mxu0 %v1005
  %v1073 = vpop.f32.mrb[0].mxu0
  %v1074 = vadd.f32 0.0, %v1073
  %v1075 = vpop.f32.mrb[0].mxu0
  %1076 = vdwg.mxu0
  %v1077 = vadd.f32 %v177, %v1074
  %v1078 = vxor.u32 %v1077, 2147483648
  %v1079 = vmul.f32 %v1078, 1.442695
  %v1080 = vpow.pop %v1079
  %v1081 = vadd.f32 %v1080, 1.0
  %v1082 = vrcp.pop %v1081
  %v1083 = vmul.f32 1.0, %v1082
  %v1084 = vtanh.pop %v1077
  %v1085 = vmul.f32 %v1083, %v995
  %1087 = vrot.lane.b32.xlu0 %v1084, 32
  %v1088 = vpop.permute.xlu0 %1087
  %v1090 = vmul.f32 %v1083, %v1088
  %1092 = vrot.lane.b32.xlu0 %v1090, 32
  %v1093 = vpop.permute.xlu0 %1092
  %v1095 = vadd.f32 %v1085, %v1093
  %v1096 = vtanh.pop %v1095
  %1098 = vrot.lane.b32.xlu0 %v1096, 32
  %v1099 = vpop.permute.xlu0 %1098
  %v1101 = vmul.f32 %v1083, %v1099
  %1103 = vrot.lane.b32.xlu0 %v1101, 64
  %v1104 = vpop.permute.xlu0 %1103
  %1106 = vst.msk [vmem:[%s4] sm:$0xff] %vm203, %v1104
  %1108 = vrot.lane.b32.xlu0 %v202, 96
  %v1109 = vpop.permute.xlu0 %1108
  %vm1111 = vcmask 523520
  %1112 = vst.msk [vmem:[%s4] sm:$0xff] %vm1111, %v1109
  // Predicated region
  $region18: #{_lambda_.1} parent=0 // pred_check
    _
  $region19: #{_lambda_.1} parent=0 // pred_check_branch
    %1114 = sbr.rel (0) target = $region21
  $region20: #{_lambda_.1} parent=0 // pred_region
    _
  $region21: #{_lambda_.1} parent=0 // pred_fallthru
    _
  // Predicated region
  $region22: #{_lambda_.1} parent=0 // pred_check
    _
  $region23: #{_lambda_.1} parent=0 // pred_check_branch
    %1116 = sbr.rel (0) target = $region25
  $region24: #{_lambda_.1} parent=0 // pred_region
    _
  $region25: #{_lambda_.1} parent=0 // pred_fallthru
    _

</llo_original>
